<compile_context>
chip_gen: v7x
topology: tpu7x:2x2x1
jax: 0.10.0
libtpu: 0.0.40
codegen_flags: <defaults>
</compile_context>

<pallas_src>
import jax
import jax.numpy as jnp
from jax.experimental import pallas as pl
from jax.experimental.pallas import tpu as pltpu

EPS = 1e-12          # torch F.normalize eps
EPS2 = EPS * EPS     # guard on the squared norm == clamp_min(eps) on the norm

_S_TILE_CANDIDATES = (4096, 2048, 1024, 512, 256, 128)


def _make_kernel(S, s_tile, needs_mask):
    """Build the per-(sample, spatial-tile) kernel body (S, s_tile static)."""

    def kernel(x_ref, wpool_ref, wconv_ref, cent_ref, out_ref, atf_ref, asum_ref):
        # x_ref     : (1, Cb, tS)  trunk features (native channel-major layout)
        # wpool_ref : (D, Cb) bf16 channel_pool 1x1 conv weight (canonical orientation)
        # wconv_ref : (K, D)  bf16 soft-assignment 1x1 conv weight
        # cent_ref  : (K, D)  f32  centroids
        # out_ref   : (1, K, D) f32 normalized VLAD descriptor (flattened outside)
        # atf_ref   : (D, K)  f32  scratch: sum_s f[d,s] * a[k,s]   (channel-major)
        # asum_ref  : (K, 1)  f32  scratch: sum_s a[k,s]
        s_idx = pl.program_id(1)
        n_s = pl.num_programs(1)

        @pl.when(s_idx == 0)
        def _init():
            atf_ref[...] = jnp.zeros_like(atf_ref)
            asum_ref[...] = jnp.zeros_like(asum_ref)

        x_blk = x_ref[0].astype(jnp.bfloat16)                     # (Cb, tS)

        # channel_pool 1x1 conv, canonical MXU orientation: (D, Cb) @ (Cb, tS) -> (D, tS)
        f = jnp.dot(wpool_ref[...], x_blk,
                    preferred_element_type=jnp.float32)           # (D, tS) f32

        if needs_mask:
            col = s_idx * s_tile + jax.lax.broadcasted_iota(jnp.int32, (1, s_tile), 1)
            valid = col < S                                        # (1, tS)
            f = jnp.where(valid, f, 0.0)                           # kill padded columns

        # normalize_input: per-location L2 norm over D (sublane reduction, rsqrt -> EUP).
        ssq = jnp.sum(f * f, axis=0, keepdims=True)                # (1, tS)
        f = f * jax.lax.rsqrt(jnp.maximum(ssq, EPS2))
        f16 = f.astype(jnp.bfloat16)

        # soft assignment: (K, D) @ (D, tS) -> (K, tS); stable softmax over clusters (sublanes).
        logits = jnp.dot(wconv_ref[...], f16,
                         preferred_element_type=jnp.float32)       # (K, tS)
        logits = logits - jnp.max(logits, axis=0, keepdims=True)
        e = jnp.exp(logits)
        a = e * pl.reciprocal(jnp.sum(e, axis=0, keepdims=True), approx=True)

        if needs_mask:
            a = jnp.where(valid, a, 0.0)                           # padded cols carry no mass

        # VLAD partial sums (f32 scratch accumulation across spatial tiles):
        #   atf[d,k] += sum_s f[d,s] * a[k,s]   (bf16 MXU, f32 accumulate)
        #   asum[k]  += sum_s a[k,s]
        atf_ref[...] += jnp.einsum("ds,ks->dk", f16, a.astype(jnp.bfloat16),
                                   preferred_element_type=jnp.float32)   # (D, K)
        asum_ref[...] += jnp.sum(a, axis=1, keepdims=True)                # (K, 1)

        @pl.when(s_idx == n_s - 1)
        def _finalize():
            # vlad[k,d] = atf[d,k] - C[k,d] * asum[k]   (single small transpose per sample)
            vlad = jnp.transpose(atf_ref[...]) - cent_ref[...] * asum_ref[...]   # (K, D)

            # intra-normalization (over D, per cluster)
            issq = jnp.sum(vlad * vlad, axis=-1, keepdims=True)
            vlad = vlad * jax.lax.rsqrt(jnp.maximum(issq, EPS2))

            # flatten + L2 normalize (aggregation), then the L2Norm module again
            # (numerically redundant, kept to mirror the PyTorch forward).
            g1 = jnp.sum(vlad * vlad)
            vlad = vlad * jax.lax.rsqrt(jnp.maximum(g1, EPS2))
            g2 = jnp.sum(vlad * vlad)
            vlad = vlad * jax.lax.rsqrt(jnp.maximum(g2, EPS2))

            out_ref[0] = vlad.astype(out_ref.dtype)

    return kernel


def _vmem_plan(Cb, x_itemsize):
    """Spatial-tile cap + scoped-VMEM limit for this chip generation."""
    try:
        vmem_cap = pltpu.get_tpu_info().vmem_capacity_bytes
    except Exception:
        vmem_cap = 64 << 20                       # conservative: v7x per-TensorCore VMEM
    if vmem_cap >= (96 << 20):                    # v5e / v6e: 128 MiB physical
        vmem_limit = 96 << 20
    else:                                         # v7x: 64 MiB
        vmem_limit = 48 << 20
    # Double-buffered feature block gets at most ~half the scoped limit; the rest is
    # residents, accumulators and compiler-internal scratch for the (D|K, tS) intermediates.
    budget = vmem_limit // 2
    cap = budget // (2 * Cb * x_itemsize)
    cap = max(128, min(4096, cap))
    return cap, vmem_limit


def _pick_s_tile(S, cap):
    cands = [c for c in _S_TILE_CANDIDATES if c <= cap]
    if not cands:
        cands = [128]
    for c in cands:                # exact divisor -> no remainder masking
        if S % c == 0:
            return c
    for c in cands:                # largest tile not exceeding S -> masked remainder tile
        if c <= S:
            return c
    return cands[-1]               # S < 128: single masked tile


def netvlad_forward(x_nchw, w_pool, w_conv, centroids, *, s_tile=None):
    """x_nchw: (N, Cb, H, W) trunk features; returns (N, K*D) descriptors.

    w_pool: (D, Cb) channel_pool weight, w_conv: (K, D) assignment weight,
    centroids: (K, D).
    """
    N, Cb, H, W = x_nchw.shape
    D = w_pool.shape[0]       # 128
    K = w_conv.shape[0]       # 64
    S = H * W

    # Native layout: NCHW -> (N, Cb, S) is a pure reshape (no HBM transpose pass).
    # No wrapper-side dtype cast (that would be an extra HBM read+write of the whole
    # feature map); the kernel casts each tile to bf16 on-chip.
    x_feat = x_nchw.reshape(N, Cb, S)
    x_itemsize = jnp.dtype(x_feat.dtype).itemsize

    s_cap, vmem_limit = _vmem_plan(Cb, x_itemsize)
    if s_tile is None:
        s_tile = _pick_s_tile(S, s_cap)
    assert s_tile == S or s_tile % 128 == 0, (S, s_tile)
    n_s = (S + s_tile - 1) // s_tile
    needs_mask = (S % s_tile) != 0

    wpool_dc = w_pool.astype(jnp.bfloat16)       # (D, Cb) — canonical, no transpose
    wconv_kd = w_conv.astype(jnp.bfloat16)       # (K, D)
    cent = centroids.astype(jnp.float32)         # (K, D)

    # Small constant weights: whole-array VMEM residents (no pipelining / double-buffering).
    vmem_resident = pl.BlockSpec(memory_space=pltpu.MemorySpace.VMEM)

    # If a genuinely small spatial tile must be kept, deepen its pipeline to hide DMA issue
    # latency; at large tiles the default double-buffering is enough.
    x_spec_kwargs = {}
    if n_s > 1 and s_tile <= 128:
        x_spec_kwargs["pipeline_mode"] = pl.Buffered(3)
    x_spec = pl.BlockSpec((1, Cb, s_tile), lambda n, s: (n, 0, s), **x_spec_kwargs)

    flops = 2 * N * S * (Cb * D + 2 * D * K)
    transcendentals = N * S * (K + 2)
    bytes_accessed = (x_feat.size * x_itemsize + wpool_dc.size * 2
                      + wconv_kd.size * 2 + cent.size * 4 + N * K * D * 4)

    out = pl.pallas_call(
        _make_kernel(S, s_tile, needs_mask),
        out_shape=jax.ShapeDtypeStruct((N, K, D), jnp.float32),
        grid=(N, n_s),
        in_specs=[
            x_spec,             # trunk features (channel-major spatial tiles)
            vmem_resident,      # wpool (D, Cb)
            vmem_resident,      # wconv (K, D)
            vmem_resident,      # centroids (K, D)
        ],
        out_specs=pl.BlockSpec((1, K, D), lambda n, s: (n, 0, 0)),
        scratch_shapes=[
            pltpu.VMEM((D, K), jnp.float32),   # atf accumulator (channel-major)
            pltpu.VMEM((K, 1), jnp.float32),   # cluster-mass accumulator
        ],
        compiler_params=pltpu.CompilerParams(
            dimension_semantics=("parallel", "arbitrary"),
            vmem_limit_bytes=int(vmem_limit)),
        cost_estimate=pl.CostEstimate(
            flops=flops,
            transcendentals=transcendentals,
            bytes_accessed=bytes_accessed),
    )(x_feat, wpool_dc, wconv_kd, cent)

    return out.reshape(N, K * D)


def netvlad_reference(x_nchw, w_pool, w_conv, centroids):
    """Plain-JAX (f32) mirror of the PyTorch forward, for a sanity check."""
    N, Cb, H, W = x_nchw.shape
    D = w_pool.shape[0]
    K = w_conv.shape[0]
    S = H * W
    f = jnp.einsum("nchw,dc->ndhw", x_nchw, w_pool)                     # channel_pool
    nrm = jnp.sqrt(jnp.sum(f * f, axis=1, keepdims=True))
    f = f / jnp.maximum(nrm, EPS)                                       # F.normalize dim=1
    xf = f.reshape(N, D, S)
    sa = jnp.einsum("nds,kd->nks", xf, w_conv)                          # 1x1 conv
    sa = jax.nn.softmax(sa, axis=1)                                     # softmax over K
    vlad = (jnp.einsum("nks,nds->nkd", sa, xf)
            - centroids[None] * jnp.sum(sa, axis=2)[..., None])
    vlad = vlad / jnp.maximum(
        jnp.sqrt(jnp.sum(vlad * vlad, axis=2, keepdims=True)), EPS)     # intra-norm
    v = vlad.reshape(N, -1)
    v = v / jnp.maximum(jnp.linalg.norm(v, axis=1, keepdims=True), EPS)
    v = v / jnp.maximum(jnp.linalg.norm(v, axis=1, keepdims=True), EPS)  # L2Norm module
    return v


if __name__ == "__main__":
    # Module-implied sizes: clusters_num=64, dim=128, channel_pool in=1024
    # (resnet50 with layer4 cropped). Small batch/spatial for the demo.
    N, Cb = 2, 1024
    D, K = 128, 64

    key = jax.random.PRNGKey(0)
    k_x, k_pool, k_conv, k_cent, k_x2 = jax.random.split(key, 5)

    # Deterministic synthetic parameters (shapes from the module __init__).
    w_pool = jax.random.normal(k_pool, (D, Cb), dtype=jnp.float32) * 0.02   # Conv2d(1024,128,1)
    w_conv = jax.random.normal(k_conv, (K, D), dtype=jnp.float32) * 0.1     # Conv2d(128,64,1)
    centroids = jax.random.uniform(k_cent, (K, D), dtype=jnp.float32)       # torch.rand(64,128)

    # 1) Divisible spatial size (16x16 = 256), auto tile (single spatial block / sample).
    x1 = jax.random.normal(k_x, (N, Cb, 16, 16), dtype=jnp.float32)
    out1 = jax.block_until_ready(netvlad_forward(x1, w_pool, w_conv, centroids))
    ref1 = netvlad_reference(x1, w_pool, w_conv, centroids)
    err1 = float(jnp.max(jnp.abs(out1 - ref1)))
    assert out1.shape == (N, K * D), out1.shape
    assert err1 < 1e-2, f"divisible-S mismatch vs reference: {err1}"

    # 2) Forced small tile: multi-tile accumulation + deeper (Buffered(3)) feature pipeline.
    out2 = jax.block_until_ready(
        netvlad_forward(x1, w_pool, w_conv, centroids, s_tile=128))
    err2 = float(jnp.max(jnp.abs(out2 - ref1)))
    assert err2 < 1e-2, f"multi-tile mismatch vs reference: {err2}"

    # 3) Non-divisible spatial size (18x18 = 324): masked remainder tile path.
    x3 = jax.random.normal(k_x2, (N, Cb, 18, 18), dtype=jnp.float32)
    out3 = jax.block_until_ready(netvlad_forward(x3, w_pool, w_conv, centroids))
    ref3 = netvlad_reference(x3, w_pool, w_conv, centroids)
    err3 = float(jnp.max(jnp.abs(out3 - ref3)))
    assert err3 < 1e-2, f"masked-remainder mismatch vs reference: {err3}"

    print("KERNEL_OK")
</pallas_src>

<mosaic_0001>
module attributes {stable_mosaic.version = 11 : i64} {
  func.func @kernel(%arg0: i32, %arg1: i32, %arg2: memref<1x1024x256xf32, #tpu.memory_space<vmem>>, %arg3: memref<128x1024xbf16, #tpu.memory_space<vmem>>, %arg4: memref<64x128xbf16, #tpu.memory_space<vmem>>, %arg5: memref<64x128xf32, #tpu.memory_space<vmem>>, %arg6: memref<1x64x128xf32, #tpu.memory_space<vmem>>, %arg7: memref<128x64xf32, #tpu.memory_space<vmem>>, %arg8: memref<64x1xf32, #tpu.memory_space<vmem>>) attributes {dimension_semantics = [#tpu.dimension_semantics<parallel>, #tpu.dimension_semantics<arbitrary>], iteration_bounds = array<i64: 2, 1>, scalar_prefetch = 0 : i64, scratch_operands = 2 : i64, tpu.core_type = #tpu.core_type<tc>, window_params = [{transform_indices = @transform_0, window_bounds = array<i64: 1, 1024, 256>}, {pipeline_mode = #tpu.pipeline_mode<synchronous>, transform_indices = @transform_1, window_bounds = array<i64: 128, 1024>}, {pipeline_mode = #tpu.pipeline_mode<synchronous>, transform_indices = @transform_2, window_bounds = array<i64: 64, 128>}, {pipeline_mode = #tpu.pipeline_mode<synchronous>, transform_indices = @transform_3, window_bounds = array<i64: 64, 128>}, {transform_indices = @transform_4, window_bounds = array<i64: 1, 64, 128>}]} {
    %c0_i32 = arith.constant 0 : i32
    %0 = arith.cmpi eq, %arg1, %c0_i32 : i32
    %1 = arith.extui %0 : i1 to i32
    %c0_i32_0 = arith.constant 0 : i32
    %2 = arith.cmpi ne, %1, %c0_i32_0 : i32
    scf.if %2 {
      %cst_24 = arith.constant 0.000000e+00 : f32
      %42 = vector.broadcast %cst_24 : f32 to vector<128x64xf32>
      %c0_25 = arith.constant 0 : index
      %c0_26 = arith.constant 0 : index
      %43 = vector.load %arg7[%c0_25, %c0_26] : memref<128x64xf32, #tpu.memory_space<vmem>>, vector<128x64xf32>
      tpu.vector_store %arg7[%c0_25, %c0_26], %42 {strides = array<i32>} : memref<128x64xf32, #tpu.memory_space<vmem>>, vector<128x64xf32>,
      %cst_27 = arith.constant 0.000000e+00 : f32
      %44 = vector.broadcast %cst_27 : f32 to vector<64x1xf32>
      %c0_28 = arith.constant 0 : index
      %c0_29 = arith.constant 0 : index
      %45 = vector.load %arg8[%c0_28, %c0_29] : memref<64x1xf32, #tpu.memory_space<vmem>>, vector<64x1xf32>
      tpu.vector_store %arg8[%c0_28, %c0_29], %44 {strides = array<i32>} : memref<64x1xf32, #tpu.memory_space<vmem>>, vector<64x1xf32>,
    } else {
    }
    %c0 = arith.constant 0 : index
    %c0_1 = arith.constant 0 : index
    %c0_2 = arith.constant 0 : index
    %3 = vector.load %arg2[%c0, %c0_1, %c0_2] : memref<1x1024x256xf32, #tpu.memory_space<vmem>>, vector<1x1024x256xf32>
    %4 = vector.shape_cast %3 : vector<1x1024x256xf32> to vector<1024x256xf32>
    %5 = arith.truncf %4 : vector<1024x256xf32> to vector<1024x256xbf16>
    %c0_3 = arith.constant 0 : index
    %c0_4 = arith.constant 0 : index
    %6 = vector.load %arg3[%c0_3, %c0_4] : memref<128x1024xbf16, #tpu.memory_space<vmem>>, vector<128x1024xbf16>
    %cst = arith.constant dense<0.000000e+00> : vector<128x256xf32>
    %7 = tpu.matmul %6, %5, %cst {dimension_numbers = #tpu.dot_dimension_numbers<[1], [0], [0], [1], [0, 0, 1, 1], [], []>} : vector<128x1024xbf16>, vector<1024x256xbf16>, vector<128x256xf32> -> vector<128x256xf32>
    %8 = arith.mulf %7, %7 : vector<128x256xf32>
    %cst_5 = arith.constant dense<0.000000e+00> : vector<256xf32>
    %9 = vector.multi_reduction <add>, %8, %cst_5 [0] : vector<128x256xf32> to vector<256xf32>
    %10 = vector.shape_cast %9 : vector<256xf32> to vector<1x256xf32>
    %cst_6 = arith.constant 1.000000e-24 : f32
    %11 = vector.broadcast %cst_6 : f32 to vector<1x256xf32>
    %12 = arith.maximumf %10, %11 : vector<1x256xf32>
    %13 = math.rsqrt %12 : vector<1x256xf32>
    %14 = vector.broadcast %13 : vector<1x256xf32> to vector<128x256xf32>
    %15 = arith.mulf %7, %14 : vector<128x256xf32>
    %16 = arith.truncf %15 : vector<128x256xf32> to vector<128x256xbf16>
    %c0_7 = arith.constant 0 : index
    %c0_8 = arith.constant 0 : index
    %17 = vector.load %arg4[%c0_7, %c0_8] : memref<64x128xbf16, #tpu.memory_space<vmem>>, vector<64x128xbf16>
    %cst_9 = arith.constant dense<0.000000e+00> : vector<64x256xf32>
    %18 = tpu.matmul %17, %16, %cst_9 {dimension_numbers = #tpu.dot_dimension_numbers<[1], [0], [0], [1], [0, 0, 1, 1], [], []>} : vector<64x128xbf16>, vector<128x256xbf16>, vector<64x256xf32> -> vector<64x256xf32>
    %cst_10 = arith.constant dense<0xFF800000> : vector<256xf32>
    %19 = vector.multi_reduction <maximumf>, %18, %cst_10 [0] : vector<64x256xf32> to vector<256xf32>
    %20 = vector.shape_cast %19 : vector<256xf32> to vector<1x256xf32>
    %21 = vector.broadcast %20 : vector<1x256xf32> to vector<64x256xf32>
    %22 = arith.subf %18, %21 : vector<64x256xf32>
    %23 = math.exp %22 : vector<64x256xf32>
    %cst_11 = arith.constant dense<0.000000e+00> : vector<256xf32>
    %24 = vector.multi_reduction <add>, %23, %cst_11 [0] : vector<64x256xf32> to vector<256xf32>
    %25 = vector.shape_cast %24 : vector<256xf32> to vector<1x256xf32>
    %26 = tpu.reciprocal %25 {approx = true} : vector<1x256xf32> -> vector<1x256xf32>
    %27 = vector.broadcast %26 : vector<1x256xf32> to vector<64x256xf32>
    %28 = arith.mulf %23, %27 : vector<64x256xf32>
    %c0_12 = arith.constant 0 : index
    %c0_13 = arith.constant 0 : index
    %29 = vector.load %arg7[%c0_12, %c0_13] : memref<128x64xf32, #tpu.memory_space<vmem>>, vector<128x64xf32>
    %30 = arith.truncf %28 : vector<64x256xf32> to vector<64x256xbf16>
    "tpu.trace_start"() <{level = 10 : i32, message = "ds,ks->dk"}> : () -> ()
    %cst_14 = arith.constant dense<0.000000e+00> : vector<128x64xf32>
    %31 = tpu.matmul %16, %30, %cst_14 {dimension_numbers = #tpu.dot_dimension_numbers<[1], [1], [0], [0], [0, 0, 1, 0], [], []>} : vector<128x256xbf16>, vector<64x256xbf16>, vector<128x64xf32> -> vector<128x64xf32>
    "tpu.trace_stop"() : () -> ()
    %32 = arith.addf %29, %31 : vector<128x64xf32>
    %c0_15 = arith.constant 0 : index
    %c0_16 = arith.constant 0 : index
    %33 = vector.load %arg7[%c0_15, %c0_16] : memref<128x64xf32, #tpu.memory_space<vmem>>, vector<128x64xf32>
    tpu.vector_store %arg7[%c0_15, %c0_16], %32 {strides = array<i32>} : memref<128x64xf32, #tpu.memory_space<vmem>>, vector<128x64xf32>,
    %c0_17 = arith.constant 0 : index
    %c0_18 = arith.constant 0 : index
    %34 = vector.load %arg8[%c0_17, %c0_18] : memref<64x1xf32, #tpu.memory_space<vmem>>, vector<64x1xf32>
    %cst_19 = arith.constant dense<0.000000e+00> : vector<64xf32>
    %35 = vector.multi_reduction <add>, %28, %cst_19 [1] : vector<64x256xf32> to vector<64xf32>
    %36 = vector.shape_cast %35 : vector<64xf32> to vector<64x1xf32>
    %37 = arith.addf %34, %36 : vector<64x1xf32>
    %c0_20 = arith.constant 0 : index
    %c0_21 = arith.constant 0 : index
    %38 = vector.load %arg8[%c0_20, %c0_21] : memref<64x1xf32, #tpu.memory_space<vmem>>, vector<64x1xf32>
    tpu.vector_store %arg8[%c0_20, %c0_21], %37 {strides = array<i32>} : memref<64x1xf32, #tpu.memory_space<vmem>>, vector<64x1xf32>,
    %c0_i32_22 = arith.constant 0 : i32
    %39 = arith.cmpi eq, %arg1, %c0_i32_22 : i32
    %40 = arith.extui %39 : i1 to i32
    %c0_i32_23 = arith.constant 0 : i32
    %41 = arith.cmpi ne, %40, %c0_i32_23 : i32
    scf.if %41 {
      %c0_24 = arith.constant 0 : index
      %c0_25 = arith.constant 0 : index
      %42 = vector.load %arg7[%c0_24, %c0_25] : memref<128x64xf32, #tpu.memory_space<vmem>>, vector<128x64xf32>
      %43 = tpu.transpose %42, [1, 0] : vector<128x64xf32> -> vector<64x128xf32>
      %c0_26 = arith.constant 0 : index
      %c0_27 = arith.constant 0 : index
      %44 = vector.load %arg5[%c0_26, %c0_27] : memref<64x128xf32, #tpu.memory_space<vmem>>, vector<64x128xf32>
      %c0_28 = arith.constant 0 : index
      %c0_29 = arith.constant 0 : index
      %45 = vector.load %arg8[%c0_28, %c0_29] : memref<64x1xf32, #tpu.memory_space<vmem>>, vector<64x1xf32>
      %46 = vector.broadcast %45 : vector<64x1xf32> to vector<64x128xf32>
      %47 = arith.mulf %44, %46 : vector<64x128xf32>
      %48 = arith.subf %43, %47 : vector<64x128xf32>
      %49 = arith.mulf %48, %48 : vector<64x128xf32>
      %cst_30 = arith.constant dense<0.000000e+00> : vector<64xf32>
      %50 = vector.multi_reduction <add>, %49, %cst_30 [1] : vector<64x128xf32> to vector<64xf32>
      %51 = vector.shape_cast %50 : vector<64xf32> to vector<64x1xf32>
      %cst_31 = arith.constant 1.000000e-24 : f32
      %52 = vector.broadcast %cst_31 : f32 to vector<64x1xf32>
      %53 = arith.maximumf %51, %52 : vector<64x1xf32>
      %54 = math.rsqrt %53 : vector<64x1xf32>
      %55 = vector.broadcast %54 : vector<64x1xf32> to vector<64x128xf32>
      %56 = arith.mulf %48, %55 : vector<64x128xf32>
      %57 = arith.mulf %56, %56 : vector<64x128xf32>
      %58 = vector.shape_cast %57 : vector<64x128xf32> to vector<1x64x128xf32>
      %cst_32 = arith.constant dense<0.000000e+00> : vector<1xf32>
      %59 = vector.multi_reduction <add>, %58, %cst_32 [1, 2] : vector<1x64x128xf32> to vector<1xf32>
      %60 = vector.shape_cast %59 : vector<1xf32> to vector<1x1x1xf32>
      %61 = vector.extract %60[0, 0, 0] : f32 from vector<1x1x1xf32>
      %cst_33 = arith.constant 1.000000e-24 : f32
      %62 = arith.maximumf %61, %cst_33 : f32
      %63 = math.rsqrt %62 : f32
      %64 = vector.broadcast %63 : f32 to vector<64x128xf32>
      %65 = arith.mulf %56, %64 : vector<64x128xf32>
      %66 = arith.mulf %65, %65 : vector<64x128xf32>
      %67 = vector.shape_cast %66 : vector<64x128xf32> to vector<1x64x128xf32>
      %cst_34 = arith.constant dense<0.000000e+00> : vector<1xf32>
      %68 = vector.multi_reduction <add>, %67, %cst_34 [1, 2] : vector<1x64x128xf32> to vector<1xf32>
      %69 = vector.shape_cast %68 : vector<1xf32> to vector<1x1x1xf32>
      %70 = vector.extract %69[0, 0, 0] : f32 from vector<1x1x1xf32>
      %cst_35 = arith.constant 1.000000e-24 : f32
      %71 = arith.maximumf %70, %cst_35 : f32
      %72 = math.rsqrt %71 : f32
      %73 = vector.broadcast %72 : f32 to vector<64x128xf32>
      %74 = arith.mulf %65, %73 : vector<64x128xf32>
      %c0_36 = arith.constant 0 : index
      %c0_37 = arith.constant 0 : index
      %c0_38 = arith.constant 0 : index
      %75 = vector.load %arg6[%c0_36, %c0_37, %c0_38] : memref<1x64x128xf32, #tpu.memory_space<vmem>>, vector<1x64x128xf32>
      %76 = vector.shape_cast %75 : vector<1x64x128xf32> to vector<64x128xf32>
      %77 = vector.shape_cast %74 : vector<64x128xf32> to vector<1x64x128xf32>
      tpu.vector_store %arg6[%c0_36, %c0_37, %c0_38], %77 {strides = array<i32>} : memref<1x64x128xf32, #tpu.memory_space<vmem>>, vector<1x64x128xf32>,
    } else {
    }
    return
  }
  func.func @transform_0(%arg0: i32, %arg1: i32) -> (i32, i32, i32) {
    %c0_i32 = arith.constant 0 : i32
    %c0_i32_0 = arith.constant 0 : i32
    return %arg0, %c0_i32, %arg1 : i32, i32, i32
  }
  func.func @transform_1(%arg0: i32, %arg1: i32) -> (i32, i32) {
    %c0_i32 = arith.constant 0 : i32
    %c0_i32_0 = arith.constant 0 : i32
    %c0_i32_1 = arith.constant 0 : i32
    return %c0_i32, %c0_i32_0 : i32, i32
  }
  func.func @transform_2(%arg0: i32, %arg1: i32) -> (i32, i32) {
    %c0_i32 = arith.constant 0 : i32
    %c0_i32_0 = arith.constant 0 : i32
    %c0_i32_1 = arith.constant 0 : i32
    return %c0_i32, %c0_i32_0 : i32, i32
  }
  func.func @transform_3(%arg0: i32, %arg1: i32) -> (i32, i32) {
    %c0_i32 = arith.constant 0 : i32
    %c0_i32_0 = arith.constant 0 : i32
    %c0_i32_1 = arith.constant 0 : i32
    return %c0_i32, %c0_i32_0 : i32, i32
  }
  func.func @transform_4(%arg0: i32, %arg1: i32) -> (i32, i32, i32) {
    %c0_i32 = arith.constant 0 : i32
    %c0_i32_0 = arith.constant 0 : i32
    %c0_i32_1 = arith.constant 0 : i32
    return %arg0, %c0_i32, %c0_i32_0 : i32, i32, i32
  }
}

</mosaic_0001>

<llo_original>
// kernel: tpu_custom_call.1
$region0: #{tpu_custom_call.1}
  #allocation0 [shape = 'u32[]', space=smem, size = 0x4, offset = 0x4, fixed_abs, tag = 'smem constant byte address 0x4 - core index']
  #allocation1 [shape = 'u32[144,128]{1,0:T(1,128)}', space=vmem, size = 0x12000, scoped, tag = 'internal scratch']
  #allocation2 [shape = 'f32[128,64]{1,0:T(8,128)}', space=vmem, size = 0x10000, scoped, tag = 'scratch operand']
  #allocation3 [shape = 'f32[64,1]{1,0:T(8,128)}', space=vmem, size = 0x8000, scoped, tag = 'scratch operand']
  %s0 = inlined_call_operand.hbm [shape: f32[2,1024,256], index: 0, kind: input, shape index: {}]
  %s1 = inlined_call_operand.hbm [shape: bf16[128,1024], index: 1, kind: input, shape index: {}]
  %s2 = inlined_call_operand.hbm [shape: bf16[64,128], index: 2, kind: input, shape index: {}]
  %s3 = inlined_call_operand.hbm [shape: f32[64,128], index: 3, kind: input, shape index: {}]
  %s4 = inlined_call_operand.hbm [shape: f32[2,64,128], index: 4, kind: output, shape index: {}]
  %s5 = sld [smem:[#allocation0]]
  $region73: #{tpu_custom_call.1} parent=0
    _
  %s7 = ssub.s32 1, %s5
  %s8 = scalar_select 0, %s7, %s5
  $region1: #{tpu_custom_call.1} parent=0
    #allocation4 [shape = 'u8[2097152]{0}', space=vmem, size = 0x200000, scoped, tag = 'input window, operand 0']
    #allocation5 [shape = 's32[2]{0}', space=sflag, size = 0x8, scoped, tag = 'scoped memory for tpu_custom_call.1']
    #allocation6 [shape = 's32[2]{0}', space=sflag, size = 0x8, scoped, tag = 'scoped memory for tpu_custom_call.1']
    #allocation7 [shape = 'u8[262144]{0}', space=vmem, size = 0x40000, scoped, tag = 'input window, operand 1, single buffered']
    #allocation8 [shape = 's32[1]{0}', space=sflag, size = 0x4, scoped, tag = 'scoped memory for tpu_custom_call.1']
    #allocation9 [shape = 'u8[16384]{0}', space=vmem, size = 0x4000, scoped, tag = 'input window, operand 2, single buffered']
    #allocation10 [shape = 'u8[32768]{0}', space=vmem, size = 0x8000, scoped, tag = 'input window, operand 3, single buffered']
    #allocation11 [shape = 's32[1]{0}', space=sflag, size = 0x4, scoped, tag = 'scoped memory for tpu_custom_call.1']
    #allocation12 [shape = 'u8[65536]{0}', space=vmem, size = 0x10000, scoped, tag = 'output window, operand 0']
    %9 = vsyncpa [#allocation5], 0
    %s10 = scalar_lea.sflag [#allocation5], 1
    %11 = vsyncpa %s10, 0
    %12 = vsyncpa [#allocation8], 0
    %13 = vsyncpa [#allocation11], 0
    %14 = vsyncpa [#allocation6], 0
    %s15 = scalar_lea.sflag [#allocation6], 1
    %16 = vsyncpa %s15, 0
    loop: start=0, step=1, limit=4
    $region2: #{tpu_custom_call.1} parent=1 // loop_pre_header
      _
    $region3: #{tpu_custom_call.1} parent=1 // loop_header
      %s18 = sphi 0, %s22
      %p19 = scmp.ge.s32.totalorder %s18, 4
      %s25 = sphi 0, %s37
      %s26 = sphi 0, %s33
      %s27 = sphi 0, %s25
      %s28 = sphi 0, %s26
      %s29 = sphi 0, %s27
      %s30 = sphi 0, %s28
      %s42 = sphi 0, %s44
      %s45 = sphi 0, %s42
      %s46 = sphi 0, %s45
      %s62 = sphi 0, %s46
      %s66 = sphi 0, %s66
      %s68 = sphi 0, %s66
      %s69 = sphi 0, %s68
      %s83 = sphi 0, %s69
      %s87 = sphi 0, %s87
      %s89 = sphi 0, %s87
      %s90 = sphi 0, %s89
      %s104 = sphi 0, %s90
      %s108 = sphi 0, %s108
      %s110 = sphi 0, %s108
      %s111 = sphi 0, %s110
      %s125 = sphi 0, %s111
      %s131 = sphi 0, %s133
      %s134 = sphi 0, %s131
      %s135 = sphi 0, %s134
      %s151 = sphi 0, %s135
    $region4: #{tpu_custom_call.1} parent=1 // loop_header_branch
      %21 = sbr.rel (%p19) target = $region8
    $region5: #{tpu_custom_call.1} parent=1 // loop_body
      %s23 = ssub.s32 %s18, 1
      %s24 = ssub.s32 %s18, 2
      %s31 = sadd.s32 1, %s26
      %p32 = scmp.ge.s32.totalorder %s31, 1
      %s33 = scalar_select %p32, 0, %s31
      %s34 = sadd.s32 1, %s25
      %s35 = scalar_select %p32, %s34, %s25
      %p36 = scmp.ge.s32.totalorder %s35, 2
      %s37 = scalar_select %p36, 0, %s35
      %s38 = ssub.s32 %s25, %s37
      %s39 = ssub.s32 %s26, %s33
      %s40 = sor.u32 %s38, %s39
      %p41 = scmp.eq.s32.totalorder %s40, 0
      %s43 = sadd.s32 %s42, 1
      %s44 = scalar_select %p41, %s42, %s43
      %p47 = pneg %p41
      %p48 = scmp.eq.s32.totalorder %s18, 1
      %p49 = por %p47, %p48
      %p50 = scmp.ne.s32.totalorder %s42, %s45
      %p51 = scmp.eq.s32.totalorder %s18, 0
      %p52 = por %p50, %p51
      %p53 = scmp.ne.s32.totalorder %s42, %s45
      %p54 = scmp.eq.s32.totalorder %s23, 1
      %p55 = por %p53, %p54
      %p56 = scmp.ne.s32.totalorder %s45, %s46
      %p57 = scmp.eq.s32.totalorder %s23, 0
      %p58 = por %p56, %p57
      %p59 = scmp.ne.s32.totalorder %s45, %s46
      %p60 = scmp.eq.s32.totalorder %s24, 1
      %p61 = por %p59, %p60
      %p63 = scmp.ne.s32.totalorder %s46, %s62
      %p64 = scmp.eq.s32.totalorder %s24, 0
      %p65 = por %p63, %p64
      %s67 = sadd.s32 %s66, 1
      %p70 = scmp.eq.s32.totalorder %s18, 1
      %p71 = scmp.ne.s32.totalorder %s66, %s68
      %p72 = scmp.eq.s32.totalorder %s18, 0
      %p73 = por %p71, %p72
      %p74 = scmp.ne.s32.totalorder %s66, %s68
      %p75 = scmp.eq.s32.totalorder %s23, 1
      %p76 = por %p74, %p75
      %p77 = scmp.ne.s32.totalorder %s68, %s69
      %p78 = scmp.eq.s32.totalorder %s23, 0
      %p79 = por %p77, %p78
      %p80 = scmp.ne.s32.totalorder %s68, %s69
      %p81 = scmp.eq.s32.totalorder %s24, 1
      %p82 = por %p80, %p81
      %p84 = scmp.ne.s32.totalorder %s69, %s83
      %p85 = scmp.eq.s32.totalorder %s24, 0
      %p86 = por %p84, %p85
      %s88 = sadd.s32 %s87, 1
      %p91 = scmp.eq.s32.totalorder %s18, 1
      %p92 = scmp.ne.s32.totalorder %s87, %s89
      %p93 = scmp.eq.s32.totalorder %s18, 0
      %p94 = por %p92, %p93
      %p95 = scmp.ne.s32.totalorder %s87, %s89
      %p96 = scmp.eq.s32.totalorder %s23, 1
      %p97 = por %p95, %p96
      %p98 = scmp.ne.s32.totalorder %s89, %s90
      %p99 = scmp.eq.s32.totalorder %s23, 0
      %p100 = por %p98, %p99
      %p101 = scmp.ne.s32.totalorder %s89, %s90
      %p102 = scmp.eq.s32.totalorder %s24, 1
      %p103 = por %p101, %p102
      %p105 = scmp.ne.s32.totalorder %s90, %s104
      %p106 = scmp.eq.s32.totalorder %s24, 0
      %p107 = por %p105, %p106
      %s109 = sadd.s32 %s108, 1
      %p112 = scmp.eq.s32.totalorder %s18, 1
      %p113 = scmp.ne.s32.totalorder %s108, %s110
      %p114 = scmp.eq.s32.totalorder %s18, 0
      %p115 = por %p113, %p114
      %p116 = scmp.ne.s32.totalorder %s108, %s110
      %p117 = scmp.eq.s32.totalorder %s23, 1
      %p118 = por %p116, %p117
      %p119 = scmp.ne.s32.totalorder %s110, %s111
      %p120 = scmp.eq.s32.totalorder %s23, 0
      %p121 = por %p119, %p120
      %p122 = scmp.ne.s32.totalorder %s110, %s111
      %p123 = scmp.eq.s32.totalorder %s24, 1
      %p124 = por %p122, %p123
      %p126 = scmp.ne.s32.totalorder %s111, %s125
      %p127 = scmp.eq.s32.totalorder %s24, 0
      %p128 = por %p126, %p127
      %s129 = ssub.s32 %s25, %s37
      %p130 = scmp.eq.s32.totalorder %s129, 0
      %s132 = sadd.s32 %s131, 1
      %s133 = scalar_select %p130, %s131, %s132
      %p136 = pneg %p130
      %p137 = scmp.eq.s32.totalorder %s18, 1
      %p138 = por %p136, %p137
      %p139 = scmp.ne.s32.totalorder %s131, %s134
      %p140 = scmp.eq.s32.totalorder %s18, 0
      %p141 = por %p139, %p140
      %p142 = scmp.ne.s32.totalorder %s131, %s134
      %p143 = scmp.eq.s32.totalorder %s23, 1
      %p144 = por %p142, %p143
      %p145 = scmp.ne.s32.totalorder %s134, %s135
      %p146 = scmp.eq.s32.totalorder %s23, 0
      %p147 = por %p145, %p146
      %p148 = scmp.ne.s32.totalorder %s134, %s135
      %p149 = scmp.eq.s32.totalorder %s24, 1
      %p150 = por %p148, %p149
      %p152 = scmp.ne.s32.totalorder %s135, %s151
      %p153 = scmp.eq.s32.totalorder %s24, 0
      %p154 = por %p152, %p153
      %p155 = scmp.le.s32.totalorder 1, %s18
      %p156 = scmp.lt.s32.totalorder %s18, 3
      %p157 = pnand %p155, %p156
      %p158 = pneg %p157
      // Predicated region
      $region9: #{tpu_custom_call.1} parent=5 // pred_check
        _
      $region10: #{tpu_custom_call.1} parent=5 // pred_check_branch
        %160 = sbr.rel (%p157) target = $region12
      $region11: #{tpu_custom_call.1} parent=5 // pred_region
        %s161 = ssub.s32 %s18, 1
        // Predicated region
        $region13: #{tpu_custom_call.1} parent=11 // pred_check
          %p162 = pneg %p79
        $region14: #{tpu_custom_call.1} parent=11 // pred_check_branch
          %164 = sbr.rel (%p162) target = $region16
        $region15: #{tpu_custom_call.1} parent=11 // pred_region
          %s166 = ssub.s32 8192, 8192
          %167 = vsyncadd [#allocation8], %s166
          %s168 = sshll.u32 [#allocation7], 4
          %s169 = int_to_ptr.vmem [resolvable:$true] %s168
          %174 = dma.hbm_to_vmem [thread:$0]  %s1, 8192, %s169, [#allocation8], 512, 512, 32
        $region16: #{tpu_custom_call.1} parent=11 // pred_fallthru
          _
        // Predicated region
        $region17: #{tpu_custom_call.1} parent=11 // pred_check
          %p175 = pneg %p100
        $region18: #{tpu_custom_call.1} parent=11 // pred_check_branch
          %177 = sbr.rel (%p175) target = $region20
        $region19: #{tpu_custom_call.1} parent=11 // pred_region
          %s179 = ssub.s32 512, 512
          %180 = vsyncadd [#allocation8], %s179
          %s181 = sshll.u32 [#allocation9], 4
          %s182 = int_to_ptr.vmem [resolvable:$true] %s181
          %187 = dma.hbm_to_vmem [thread:$0]  %s2, 512, %s182, [#allocation8], 64, 64, 4
        $region20: #{tpu_custom_call.1} parent=11 // pred_fallthru
          _
        // Predicated region
        $region21: #{tpu_custom_call.1} parent=11 // pred_check
          %p188 = pneg %p121
        $region22: #{tpu_custom_call.1} parent=11 // pred_check_branch
          %190 = sbr.rel (%p188) target = $region24
        $region23: #{tpu_custom_call.1} parent=11 // pred_region
          %s192 = ssub.s32 1024, 1024
          %193 = vsyncadd [#allocation11], %s192
          %s194 = sshll.u32 [#allocation10], 4
          %s195 = int_to_ptr.vmem [resolvable:$true] %s194
          %200 = dma.hbm_to_vmem [thread:$0]  %s3, 1024, %s195, [#allocation11], 128, 128, 8
        $region24: #{tpu_custom_call.1} parent=11 // pred_fallthru
          _
      $region12: #{tpu_custom_call.1} parent=5 // pred_fallthru
        _
      %p201 = scmp.lt.s32.totalorder %s18, 2
      // Predicated region
      $region25: #{tpu_custom_call.1} parent=5 // pred_check
        %p202 = pneg %p201
      $region26: #{tpu_custom_call.1} parent=5 // pred_check_branch
        %204 = sbr.rel (%p202) target = $region28
      $region27: #{tpu_custom_call.1} parent=5 // pred_region
        // Predicated region
        $region29: #{tpu_custom_call.1} parent=27 // pred_check
          %p205 = pneg %p52
        $region30: #{tpu_custom_call.1} parent=27 // pred_check_branch
          %207 = sbr.rel (%p205) target = $region32
        $region31: #{tpu_custom_call.1} parent=27 // pred_region
          %s208 = sand.u32 %s42, 1
          %s209 = scalar_lea.sflag [#allocation5], %s208
          %s210 = sand.u32 %s42, 1
          %s211 = smul.addr %s210, 2048
          %s212 = scalar_lea.vmem [#allocation4], %s211
          %s213 = smul.u32 2, %s26
          %s215 = ssub.s32 32768, 32768
          %216 = vsyncadd %s209, %s215
          %s217 = smul.addr %s25, 256
          %s218 = sadd.s32 %s213, %s217
          %s219 = smul.addr %s218, 128
          %s220 = scalar_lea.hbm %s0, %s219
          %s221 = sshll.u32 %s212, 4
          %s222 = int_to_ptr.vmem [resolvable:$true] %s221
          %227 = dma.hbm_to_vmem [thread:$0]  %s220, 32768, %s222, %s209, 256, 256, 16
        $region32: #{tpu_custom_call.1} parent=27 // pred_fallthru
          _
      $region28: #{tpu_custom_call.1} parent=5 // pred_fallthru
        _
      %p228 = scmp.le.s32.totalorder 1, %s18
      %p229 = scmp.lt.s32.totalorder %s18, 3
      %p230 = pnand %p228, %p229
      %p231 = pneg %p230
      // Predicated region
      $region33: #{tpu_custom_call.1} parent=5 // pred_check
        _
      $region34: #{tpu_custom_call.1} parent=5 // pred_check_branch
        %233 = sbr.rel (%p230) target = $region36
      $region35: #{tpu_custom_call.1} parent=5 // pred_region
        %s234 = ssub.s32 %s18, 1
        %s235 = sand.u32 %s45, 1
        %s236 = scalar_lea.sflag [#allocation5], %s235
        %s237 = sand.u32 %s45, 1
        %s238 = smul.addr %s237, 2048
        %s239 = scalar_lea.vmem [#allocation4], %s238
        // Predicated region
        $region37: #{tpu_custom_call.1} parent=35 // pred_check
          %p240 = pneg %p58
        $region38: #{tpu_custom_call.1} parent=35 // pred_check_branch
          %242 = sbr.rel (%p240) target = $region40
        $region39: #{tpu_custom_call.1} parent=35 // pred_region
          %243 = dma.done %s236, 32768
        $region40: #{tpu_custom_call.1} parent=35 // pred_fallthru
          _
        // Predicated region
        $region41: #{tpu_custom_call.1} parent=35 // pred_check
          %p244 = pneg %p79
        $region42: #{tpu_custom_call.1} parent=35 // pred_check_branch
          %246 = sbr.rel (%p244) target = $region44
        $region43: #{tpu_custom_call.1} parent=35 // pred_region
          %247 = dma.done [#allocation8], 8192
        $region44: #{tpu_custom_call.1} parent=35 // pred_fallthru
          _
        // Predicated region
        $region45: #{tpu_custom_call.1} parent=35 // pred_check
          %p248 = pneg %p100
        $region46: #{tpu_custom_call.1} parent=35 // pred_check_branch
          %250 = sbr.rel (%p248) target = $region48
        $region47: #{tpu_custom_call.1} parent=35 // pred_region
          %251 = dma.done [#allocation8], 512
        $region48: #{tpu_custom_call.1} parent=35 // pred_fallthru
          _
        // Predicated region
        $region49: #{tpu_custom_call.1} parent=35 // pred_check
          %p252 = pneg %p121
        $region50: #{tpu_custom_call.1} parent=35 // pred_check_branch
          %254 = sbr.rel (%p252) target = $region52
        $region51: #{tpu_custom_call.1} parent=35 // pred_region
          %255 = dma.done [#allocation11], 1024
        $region52: #{tpu_custom_call.1} parent=35 // pred_fallthru
          _
        %s256 = sand.u32 %s45, 1
        %s257 = scalar_lea.sflag [#allocation5], %s256
        %s258 = sand.u32 %s45, 1
        %s259 = smul.addr %s258, 2048
        %s260 = scalar_lea.vmem [#allocation4], %s259
        %p261 = pneg %p58
        %p262 = pneg %p55
        %p263 = pneg %p79
        %p264 = pneg %p76
        %p265 = pneg %p100
        %p266 = pneg %p97
        %p267 = pneg %p121
        %p268 = pneg %p118
        %p269 = pneg %p147
        %p270 = pneg %p144
        %s271 = sand.u32 %s134, 1
        %s272 = scalar_lea.sflag [#allocation6], %s271
        %s273 = sand.u32 %s134, 1
        %s274 = smul.addr %s273, 64
        %s275 = scalar_lea.vmem [#allocation12], %s274
        %s276 = smul.u32 2, %s28
        %p278 = scmp.eq.s32.totalorder %s28, 0
        // Predicated region
        $region53: #{tpu_custom_call.1} parent=35 // pred_check
          %p279 = pneg %p278
        $region54: #{tpu_custom_call.1} parent=35 // pred_check_branch
          %281 = sbr.rel (%p279) target = $region56
        $region55: #{tpu_custom_call.1} parent=35 // pred_region
          %vm282 = vcmask 523264
          %283 = vst.msk [vmem:[#allocation2] sm:$0xff] %vm282, 0.0
          %284 = vst.msk [vmem:[#allocation2 + $0x8] sm:$0xff] %vm282, 0.0
          %285 = vst.msk [vmem:[#allocation2 + $0x10] sm:$0xff] %vm282, 0.0
          %286 = vst.msk [vmem:[#allocation2 + $0x18] sm:$0xff] %vm282, 0.0
          %287 = vst.msk [vmem:[#allocation2 + $0x20] sm:$0xff] %vm282, 0.0
          %288 = vst.msk [vmem:[#allocation2 + $0x28] sm:$0xff] %vm282, 0.0
          %289 = vst.msk [vmem:[#allocation2 + $0x30] sm:$0xff] %vm282, 0.0
          %290 = vst.msk [vmem:[#allocation2 + $0x38] sm:$0xff] %vm282, 0.0
          %291 = vst.msk [vmem:[#allocation2 + $0x40] sm:$0xff] %vm282, 0.0
          %292 = vst.msk [vmem:[#allocation2 + $0x48] sm:$0xff] %vm282, 0.0
          %293 = vst.msk [vmem:[#allocation2 + $0x50] sm:$0xff] %vm282, 0.0
          %294 = vst.msk [vmem:[#allocation2 + $0x58] sm:$0xff] %vm282, 0.0
          %295 = vst.msk [vmem:[#allocation2 + $0x60] sm:$0xff] %vm282, 0.0
          %296 = vst.msk [vmem:[#allocation2 + $0x68] sm:$0xff] %vm282, 0.0
          %297 = vst.msk [vmem:[#allocation2 + $0x70] sm:$0xff] %vm282, 0.0
          %298 = vst.msk [vmem:[#allocation2 + $0x78] sm:$0xff] %vm282, 0.0
          %vm299 = vcmask 7168
          %300 = vst.msk [vmem:[#allocation3] sm:$0xff] %vm299, 0.0
          %301 = vst.msk [vmem:[#allocation3 + $0x8] sm:$0xff] %vm299, 0.0
          %302 = vst.msk [vmem:[#allocation3 + $0x10] sm:$0xff] %vm299, 0.0
          %303 = vst.msk [vmem:[#allocation3 + $0x18] sm:$0xff] %vm299, 0.0
          %304 = vst.msk [vmem:[#allocation3 + $0x20] sm:$0xff] %vm299, 0.0
          %305 = vst.msk [vmem:[#allocation3 + $0x28] sm:$0xff] %vm299, 0.0
          %306 = vst.msk [vmem:[#allocation3 + $0x30] sm:$0xff] %vm299, 0.0
          %307 = vst.msk [vmem:[#allocation3 + $0x38] sm:$0xff] %vm299, 0.0
        $region56: #{tpu_custom_call.1} parent=35 // pred_fallthru
          _
        %v308 = vld [vmem:[%s239] sm:$0xff]
        %v309 = vld [vmem:[%s239 + $0x8] sm:$0xff]
        %v310 = vld [vmem:[%s239 + $0x10] sm:$0xff]
        %v311 = vld [vmem:[%s239 + $0x18] sm:$0xff]
        %v312 = vld [vmem:[%s239 + $0x20] sm:$0xff]
        %v313 = vld [vmem:[%s239 + $0x28] sm:$0xff]
        %v314 = vld [vmem:[%s239 + $0x30] sm:$0xff]
        %v315 = vld [vmem:[%s239 + $0x38] sm:$0xff]
        %v316 = vld [vmem:[%s239 + $0x40] sm:$0xff]
        %v317 = vld [vmem:[%s239 + $0x48] sm:$0xff]
        %v318 = vld [vmem:[%s239 + $0x50] sm:$0xff]
        %v319 = vld [vmem:[%s239 + $0x58] sm:$0xff]
        %v320 = vld [vmem:[%s239 + $0x60] sm:$0xff]
        %v321 = vld [vmem:[%s239 + $0x68] sm:$0xff]
        %v322 = vld [vmem:[%s239 + $0x70] sm:$0xff]
        %v323 = vld [vmem:[%s239 + $0x78] sm:$0xff]
        %v324 = vld [vmem:[%s239 + $0x80] sm:$0xff]
        %v325 = vld [vmem:[%s239 + $0x88] sm:$0xff]
        %v326 = vld [vmem:[%s239 + $0x90] sm:$0xff]
        %v327 = vld [vmem:[%s239 + $0x98] sm:$0xff]
        %v328 = vld [vmem:[%s239 + $0xa0] sm:$0xff]
        %v329 = vld [vmem:[%s239 + $0xa8] sm:$0xff]
        %v330 = vld [vmem:[%s239 + $0xb0] sm:$0xff]
        %v331 = vld [vmem:[%s239 + $0xb8] sm:$0xff]
        %v332 = vld [vmem:[%s239 + $0xc0] sm:$0xff]
        %v333 = vld [vmem:[%s239 + $0xc8] sm:$0xff]
        %v334 = vld [vmem:[%s239 + $0xd0] sm:$0xff]
        %v335 = vld [vmem:[%s239 + $0xd8] sm:$0xff]
        %v336 = vld [vmem:[%s239 + $0xe0] sm:$0xff]
        %v337 = vld [vmem:[%s239 + $0xe8] sm:$0xff]
        %v338 = vld [vmem:[%s239 + $0xf0] sm:$0xff]
        %v339 = vld [vmem:[%s239 + $0xf8] sm:$0xff]
        %v340 = vld [vmem:[%s239 + $0x100] sm:$0xff]
        %v341 = vld [vmem:[%s239 + $0x108] sm:$0xff]
        %v342 = vld [vmem:[%s239 + $0x110] sm:$0xff]
        %v343 = vld [vmem:[%s239 + $0x118] sm:$0xff]
        %v344 = vld [vmem:[%s239 + $0x120] sm:$0xff]
        %v345 = vld [vmem:[%s239 + $0x128] sm:$0xff]
        %v346 = vld [vmem:[%s239 + $0x130] sm:$0xff]
        %v347 = vld [vmem:[%s239 + $0x138] sm:$0xff]
        %v348 = vld [vmem:[%s239 + $0x140] sm:$0xff]
        %v349 = vld [vmem:[%s239 + $0x148] sm:$0xff]
        %v350 = vld [vmem:[%s239 + $0x150] sm:$0xff]
        %v351 = vld [vmem:[%s239 + $0x158] sm:$0xff]
        %v352 = vld [vmem:[%s239 + $0x160] sm:$0xff]
        %v353 = vld [vmem:[%s239 + $0x168] sm:$0xff]
        %v354 = vld [vmem:[%s239 + $0x170] sm:$0xff]
        %v355 = vld [vmem:[%s239 + $0x178] sm:$0xff]
        %v356 = vld [vmem:[%s239 + $0x180] sm:$0xff]
        %v357 = vld [vmem:[%s239 + $0x188] sm:$0xff]
        %v358 = vld [vmem:[%s239 + $0x190] sm:$0xff]
        %v359 = vld [vmem:[%s239 + $0x198] sm:$0xff]
        %v360 = vld [vmem:[%s239 + $0x1a0] sm:$0xff]
        %v361 = vld [vmem:[%s239 + $0x1a8] sm:$0xff]
        %v362 = vld [vmem:[%s239 + $0x1b0] sm:$0xff]
        %v363 = vld [vmem:[%s239 + $0x1b8] sm:$0xff]
        %v364 = vld [vmem:[%s239 + $0x1c0] sm:$0xff]
        %v365 = vld [vmem:[%s239 + $0x1c8] sm:$0xff]
        %v366 = vld [vmem:[%s239 + $0x1d0] sm:$0xff]
        %v367 = vld [vmem:[%s239 + $0x1d8] sm:$0xff]
        %v368 = vld [vmem:[%s239 + $0x1e0] sm:$0xff]
        %v369 = vld [vmem:[%s239 + $0x1e8] sm:$0xff]
        %v370 = vld [vmem:[%s239 + $0x1f0] sm:$0xff]
        %v371 = vld [vmem:[%s239 + $0x1f8] sm:$0xff]
        %v372 = vld [vmem:[%s239 + $0x200] sm:$0xff]
        %v373 = vld [vmem:[%s239 + $0x208] sm:$0xff]
        %v374 = vld [vmem:[%s239 + $0x210] sm:$0xff]
        %v375 = vld [vmem:[%s239 + $0x218] sm:$0xff]
        %v376 = vld [vmem:[%s239 + $0x220] sm:$0xff]
        %v377 = vld [vmem:[%s239 + $0x228] sm:$0xff]
        %v378 = vld [vmem:[%s239 + $0x230] sm:$0xff]
        %v379 = vld [vmem:[%s239 + $0x238] sm:$0xff]
        %v380 = vld [vmem:[%s239 + $0x240] sm:$0xff]
        %v381 = vld [vmem:[%s239 + $0x248] sm:$0xff]
        %v382 = vld [vmem:[%s239 + $0x250] sm:$0xff]
        %v383 = vld [vmem:[%s239 + $0x258] sm:$0xff]
        %v384 = vld [vmem:[%s239 + $0x260] sm:$0xff]
        %v385 = vld [vmem:[%s239 + $0x268] sm:$0xff]
        %v386 = vld [vmem:[%s239 + $0x270] sm:$0xff]
        %v387 = vld [vmem:[%s239 + $0x278] sm:$0xff]
        %v388 = vld [vmem:[%s239 + $0x280] sm:$0xff]
        %v389 = vld [vmem:[%s239 + $0x288] sm:$0xff]
        %v390 = vld [vmem:[%s239 + $0x290] sm:$0xff]
        %v391 = vld [vmem:[%s239 + $0x298] sm:$0xff]
        %v392 = vld [vmem:[%s239 + $0x2a0] sm:$0xff]
        %v393 = vld [vmem:[%s239 + $0x2a8] sm:$0xff]
        %v394 = vld [vmem:[%s239 + $0x2b0] sm:$0xff]
        %v395 = vld [vmem:[%s239 + $0x2b8] sm:$0xff]
        %v396 = vld [vmem:[%s239 + $0x2c0] sm:$0xff]
        %v397 = vld [vmem:[%s239 + $0x2c8] sm:$0xff]
        %v398 = vld [vmem:[%s239 + $0x2d0] sm:$0xff]
        %v399 = vld [vmem:[%s239 + $0x2d8] sm:$0xff]
        %v400 = vld [vmem:[%s239 + $0x2e0] sm:$0xff]
        %v401 = vld [vmem:[%s239 + $0x2e8] sm:$0xff]
        %v402 = vld [vmem:[%s239 + $0x2f0] sm:$0xff]
        %v403 = vld [vmem:[%s239 + $0x2f8] sm:$0xff]
        %v404 = vld [vmem:[%s239 + $0x300] sm:$0xff]
        %v405 = vld [vmem:[%s239 + $0x308] sm:$0xff]
        %v406 = vld [vmem:[%s239 + $0x310] sm:$0xff]
        %v407 = vld [vmem:[%s239 + $0x318] sm:$0xff]
        %v408 = vld [vmem:[%s239 + $0x320] sm:$0xff]
        %v409 = vld [vmem:[%s239 + $0x328] sm:$0xff]
        %v410 = vld [vmem:[%s239 + $0x330] sm:$0xff]
        %v411 = vld [vmem:[%s239 + $0x338] sm:$0xff]
        %v412 = vld [vmem:[%s239 + $0x340] sm:$0xff]
        %v413 = vld [vmem:[%s239 + $0x348] sm:$0xff]
        %v414 = vld [vmem:[%s239 + $0x350] sm:$0xff]
        %v415 = vld [vmem:[%s239 + $0x358] sm:$0xff]
        %v416 = vld [vmem:[%s239 + $0x360] sm:$0xff]
        %v417 = vld [vmem:[%s239 + $0x368] sm:$0xff]
        %v418 = vld [vmem:[%s239 + $0x370] sm:$0xff]
        %v419 = vld [vmem:[%s239 + $0x378] sm:$0xff]
        %v420 = vld [vmem:[%s239 + $0x380] sm:$0xff]
        %v421 = vld [vmem:[%s239 + $0x388] sm:$0xff]
        %v422 = vld [vmem:[%s239 + $0x390] sm:$0xff]
        %v423 = vld [vmem:[%s239 + $0x398] sm:$0xff]
        %v424 = vld [vmem:[%s239 + $0x3a0] sm:$0xff]
        %v425 = vld [vmem:[%s239 + $0x3a8] sm:$0xff]
        %v426 = vld [vmem:[%s239 + $0x3b0] sm:$0xff]
        %v427 = vld [vmem:[%s239 + $0x3b8] sm:$0xff]
        %v428 = vld [vmem:[%s239 + $0x3c0] sm:$0xff]
        %v429 = vld [vmem:[%s239 + $0x3c8] sm:$0xff]
        %v430 = vld [vmem:[%s239 + $0x3d0] sm:$0xff]
        %v431 = vld [vmem:[%s239 + $0x3d8] sm:$0xff]
        %v432 = vld [vmem:[%s239 + $0x3e0] sm:$0xff]
        %v433 = vld [vmem:[%s239 + $0x3e8] sm:$0xff]
        %v434 = vld [vmem:[%s239 + $0x3f0] sm:$0xff]
        %v435 = vld [vmem:[%s239 + $0x3f8] sm:$0xff]
        %v436 = vld [vmem:[%s239 + $0x400] sm:$0xff]
        %v437 = vld [vmem:[%s239 + $0x408] sm:$0xff]
        %v438 = vld [vmem:[%s239 + $0x410] sm:$0xff]
        %v439 = vld [vmem:[%s239 + $0x418] sm:$0xff]
        %v440 = vld [vmem:[%s239 + $0x420] sm:$0xff]
        %v441 = vld [vmem:[%s239 + $0x428] sm:$0xff]
        %v442 = vld [vmem:[%s239 + $0x430] sm:$0xff]
        %v443 = vld [vmem:[%s239 + $0x438] sm:$0xff]
        %v444 = vld [vmem:[%s239 + $0x440] sm:$0xff]
        %v445 = vld [vmem:[%s239 + $0x448] sm:$0xff]
        %v446 = vld [vmem:[%s239 + $0x450] sm:$0xff]
        %v447 = vld [vmem:[%s239 + $0x458] sm:$0xff]
        %v448 = vld [vmem:[%s239 + $0x460] sm:$0xff]
        %v449 = vld [vmem:[%s239 + $0x468] sm:$0xff]
        %v450 = vld [vmem:[%s239 + $0x470] sm:$0xff]
        %v451 = vld [vmem:[%s239 + $0x478] sm:$0xff]
        %v452 = vld [vmem:[%s239 + $0x480] sm:$0xff]
        %v453 = vld [vmem:[%s239 + $0x488] sm:$0xff]
        %v454 = vld [vmem:[%s239 + $0x490] sm:$0xff]
        %v455 = vld [vmem:[%s239 + $0x498] sm:$0xff]
        %v456 = vld [vmem:[%s239 + $0x4a0] sm:$0xff]
        %v457 = vld [vmem:[%s239 + $0x4a8] sm:$0xff]
        %v458 = vld [vmem:[%s239 + $0x4b0] sm:$0xff]
        %v459 = vld [vmem:[%s239 + $0x4b8] sm:$0xff]
        %v460 = vld [vmem:[%s239 + $0x4c0] sm:$0xff]
        %v461 = vld [vmem:[%s239 + $0x4c8] sm:$0xff]
        %v462 = vld [vmem:[%s239 + $0x4d0] sm:$0xff]
        %v463 = vld [vmem:[%s239 + $0x4d8] sm:$0xff]
        %v464 = vld [vmem:[%s239 + $0x4e0] sm:$0xff]
        %v465 = vld [vmem:[%s239 + $0x4e8] sm:$0xff]
        %v466 = vld [vmem:[%s239 + $0x4f0] sm:$0xff]
        %v467 = vld [vmem:[%s239 + $0x4f8] sm:$0xff]
        %v468 = vld [vmem:[%s239 + $0x500] sm:$0xff]
        %v469 = vld [vmem:[%s239 + $0x508] sm:$0xff]
        %v470 = vld [vmem:[%s239 + $0x510] sm:$0xff]
        %v471 = vld [vmem:[%s239 + $0x518] sm:$0xff]
        %v472 = vld [vmem:[%s239 + $0x520] sm:$0xff]
        %v473 = vld [vmem:[%s239 + $0x528] sm:$0xff]
        %v474 = vld [vmem:[%s239 + $0x530] sm:$0xff]
        %v475 = vld [vmem:[%s239 + $0x538] sm:$0xff]
        %v476 = vld [vmem:[%s239 + $0x540] sm:$0xff]
        %v477 = vld [vmem:[%s239 + $0x548] sm:$0xff]
        %v478 = vld [vmem:[%s239 + $0x550] sm:$0xff]
        %v479 = vld [vmem:[%s239 + $0x558] sm:$0xff]
        %v480 = vld [vmem:[%s239 + $0x560] sm:$0xff]
        %v481 = vld [vmem:[%s239 + $0x568] sm:$0xff]
        %v482 = vld [vmem:[%s239 + $0x570] sm:$0xff]
        %v483 = vld [vmem:[%s239 + $0x578] sm:$0xff]
        %v484 = vld [vmem:[%s239 + $0x580] sm:$0xff]
        %v485 = vld [vmem:[%s239 + $0x588] sm:$0xff]
        %v486 = vld [vmem:[%s239 + $0x590] sm:$0xff]
        %v487 = vld [vmem:[%s239 + $0x598] sm:$0xff]
        %v488 = vld [vmem:[%s239 + $0x5a0] sm:$0xff]
        %v489 = vld [vmem:[%s239 + $0x5a8] sm:$0xff]
        %v490 = vld [vmem:[%s239 + $0x5b0] sm:$0xff]
        %v491 = vld [vmem:[%s239 + $0x5b8] sm:$0xff]
        %v492 = vld [vmem:[%s239 + $0x5c0] sm:$0xff]
        %v493 = vld [vmem:[%s239 + $0x5c8] sm:$0xff]
        %v494 = vld [vmem:[%s239 + $0x5d0] sm:$0xff]
        %v495 = vld [vmem:[%s239 + $0x5d8] sm:$0xff]
        %v496 = vld [vmem:[%s239 + $0x5e0] sm:$0xff]
        %v497 = vld [vmem:[%s239 + $0x5e8] sm:$0xff]
        %v498 = vld [vmem:[%s239 + $0x5f0] sm:$0xff]
        %v499 = vld [vmem:[%s239 + $0x5f8] sm:$0xff]
        %v500 = vld [vmem:[%s239 + $0x600] sm:$0xff]
        %v501 = vld [vmem:[%s239 + $0x608] sm:$0xff]
        %v502 = vld [vmem:[%s239 + $0x610] sm:$0xff]
        %v503 = vld [vmem:[%s239 + $0x618] sm:$0xff]
        %v504 = vld [vmem:[%s239 + $0x620] sm:$0xff]
        %v505 = vld [vmem:[%s239 + $0x628] sm:$0xff]
        %v506 = vld [vmem:[%s239 + $0x630] sm:$0xff]
        %v507 = vld [vmem:[%s239 + $0x638] sm:$0xff]
        %v508 = vld [vmem:[%s239 + $0x640] sm:$0xff]
        %v509 = vld [vmem:[%s239 + $0x648] sm:$0xff]
        %v510 = vld [vmem:[%s239 + $0x650] sm:$0xff]
        %v511 = vld [vmem:[%s239 + $0x658] sm:$0xff]
        %v512 = vld [vmem:[%s239 + $0x660] sm:$0xff]
        %v513 = vld [vmem:[%s239 + $0x668] sm:$0xff]
        %v514 = vld [vmem:[%s239 + $0x670] sm:$0xff]
        %v515 = vld [vmem:[%s239 + $0x678] sm:$0xff]
        %v516 = vld [vmem:[%s239 + $0x680] sm:$0xff]
        %v517 = vld [vmem:[%s239 + $0x688] sm:$0xff]
        %v518 = vld [vmem:[%s239 + $0x690] sm:$0xff]
        %v519 = vld [vmem:[%s239 + $0x698] sm:$0xff]
        %v520 = vld [vmem:[%s239 + $0x6a0] sm:$0xff]
        %v521 = vld [vmem:[%s239 + $0x6a8] sm:$0xff]
        %v522 = vld [vmem:[%s239 + $0x6b0] sm:$0xff]
        %v523 = vld [vmem:[%s239 + $0x6b8] sm:$0xff]
        %v524 = vld [vmem:[%s239 + $0x6c0] sm:$0xff]
        %v525 = vld [vmem:[%s239 + $0x6c8] sm:$0xff]
        %v526 = vld [vmem:[%s239 + $0x6d0] sm:$0xff]
        %v527 = vld [vmem:[%s239 + $0x6d8] sm:$0xff]
        %v528 = vld [vmem:[%s239 + $0x6e0] sm:$0xff]
        %v529 = vld [vmem:[%s239 + $0x6e8] sm:$0xff]
        %v530 = vld [vmem:[%s239 + $0x6f0] sm:$0xff]
        %v531 = vld [vmem:[%s239 + $0x6f8] sm:$0xff]
        %v532 = vld [vmem:[%s239 + $0x700] sm:$0xff]
        %v533 = vld [vmem:[%s239 + $0x708] sm:$0xff]
        %v534 = vld [vmem:[%s239 + $0x710] sm:$0xff]
        %v535 = vld [vmem:[%s239 + $0x718] sm:$0xff]
        %v536 = vld [vmem:[%s239 + $0x720] sm:$0xff]
        %v537 = vld [vmem:[%s239 + $0x728] sm:$0xff]
        %v538 = vld [vmem:[%s239 + $0x730] sm:$0xff]
        %v539 = vld [vmem:[%s239 + $0x738] sm:$0xff]
        %v540 = vld [vmem:[%s239 + $0x740] sm:$0xff]
        %v541 = vld [vmem:[%s239 + $0x748] sm:$0xff]
        %v542 = vld [vmem:[%s239 + $0x750] sm:$0xff]
        %v543 = vld [vmem:[%s239 + $0x758] sm:$0xff]
        %v544 = vld [vmem:[%s239 + $0x760] sm:$0xff]
        %v545 = vld [vmem:[%s239 + $0x768] sm:$0xff]
        %v546 = vld [vmem:[%s239 + $0x770] sm:$0xff]
        %v547 = vld [vmem:[%s239 + $0x778] sm:$0xff]
        %v548 = vld [vmem:[%s239 + $0x780] sm:$0xff]
        %v549 = vld [vmem:[%s239 + $0x788] sm:$0xff]
        %v550 = vld [vmem:[%s239 + $0x790] sm:$0xff]
        %v551 = vld [vmem:[%s239 + $0x798] sm:$0xff]
        %v552 = vld [vmem:[%s239 + $0x7a0] sm:$0xff]
        %v553 = vld [vmem:[%s239 + $0x7a8] sm:$0xff]
        %v554 = vld [vmem:[%s239 + $0x7b0] sm:$0xff]
        %v555 = vld [vmem:[%s239 + $0x7b8] sm:$0xff]
        %v556 = vld [vmem:[%s239 + $0x7c0] sm:$0xff]
        %v557 = vld [vmem:[%s239 + $0x7c8] sm:$0xff]
        %v558 = vld [vmem:[%s239 + $0x7d0] sm:$0xff]
        %v559 = vld [vmem:[%s239 + $0x7d8] sm:$0xff]
        %v560 = vld [vmem:[%s239 + $0x7e0] sm:$0xff]
        %v561 = vld [vmem:[%s239 + $0x7e8] sm:$0xff]
        %v562 = vld [vmem:[%s239 + $0x7f0] sm:$0xff]
        %v563 = vld [vmem:[%s239 + $0x7f8] sm:$0xff]
        %v564 = vpack.c.bf16 %v310, %v308
        %v565 = vpack.c.bf16 %v311, %v309
        %v566 = vpack.c.bf16 %v314, %v312
        %v567 = vpack.c.bf16 %v315, %v313
        %v568 = vpack.c.bf16 %v318, %v316
        %v569 = vpack.c.bf16 %v319, %v317
        %v570 = vpack.c.bf16 %v322, %v320
        %v571 = vpack.c.bf16 %v323, %v321
        %v572 = vpack.c.bf16 %v326, %v324
        %v573 = vpack.c.bf16 %v327, %v325
        %v574 = vpack.c.bf16 %v330, %v328
        %v575 = vpack.c.bf16 %v331, %v329
        %v576 = vpack.c.bf16 %v334, %v332
        %v577 = vpack.c.bf16 %v335, %v333
        %v578 = vpack.c.bf16 %v338, %v336
        %v579 = vpack.c.bf16 %v339, %v337
        %v580 = vpack.c.bf16 %v342, %v340
        %v581 = vpack.c.bf16 %v343, %v341
        %v582 = vpack.c.bf16 %v346, %v344
        %v583 = vpack.c.bf16 %v347, %v345
        %v584 = vpack.c.bf16 %v350, %v348
        %v585 = vpack.c.bf16 %v351, %v349
        %v586 = vpack.c.bf16 %v354, %v352
        %v587 = vpack.c.bf16 %v355, %v353
        %v588 = vpack.c.bf16 %v358, %v356
        %v589 = vpack.c.bf16 %v359, %v357
        %v590 = vpack.c.bf16 %v362, %v360
        %v591 = vpack.c.bf16 %v363, %v361
        %v592 = vpack.c.bf16 %v366, %v364
        %v593 = vpack.c.bf16 %v367, %v365
        %v594 = vpack.c.bf16 %v370, %v368
        %v595 = vpack.c.bf16 %v371, %v369
        %v596 = vpack.c.bf16 %v374, %v372
        %v597 = vpack.c.bf16 %v375, %v373
        %v598 = vpack.c.bf16 %v378, %v376
        %v599 = vpack.c.bf16 %v379, %v377
        %v600 = vpack.c.bf16 %v382, %v380
        %v601 = vpack.c.bf16 %v383, %v381
        %v602 = vpack.c.bf16 %v386, %v384
        %v603 = vpack.c.bf16 %v387, %v385
        %v604 = vpack.c.bf16 %v390, %v388
        %v605 = vpack.c.bf16 %v391, %v389
        %v606 = vpack.c.bf16 %v394, %v392
        %v607 = vpack.c.bf16 %v395, %v393
        %v608 = vpack.c.bf16 %v398, %v396
        %v609 = vpack.c.bf16 %v399, %v397
        %v610 = vpack.c.bf16 %v402, %v400
        %v611 = vpack.c.bf16 %v403, %v401
        %v612 = vpack.c.bf16 %v406, %v404
        %v613 = vpack.c.bf16 %v407, %v405
        %v614 = vpack.c.bf16 %v410, %v408
        %v615 = vpack.c.bf16 %v411, %v409
        %v616 = vpack.c.bf16 %v414, %v412
        %v617 = vpack.c.bf16 %v415, %v413
        %v618 = vpack.c.bf16 %v418, %v416
        %v619 = vpack.c.bf16 %v419, %v417
        %v620 = vpack.c.bf16 %v422, %v420
        %v621 = vpack.c.bf16 %v423, %v421
        %v622 = vpack.c.bf16 %v426, %v424
        %v623 = vpack.c.bf16 %v427, %v425
        %v624 = vpack.c.bf16 %v430, %v428
        %v625 = vpack.c.bf16 %v431, %v429
        %v626 = vpack.c.bf16 %v434, %v432
        %v627 = vpack.c.bf16 %v435, %v433
        %v628 = vpack.c.bf16 %v438, %v436
        %v629 = vpack.c.bf16 %v439, %v437
        %v630 = vpack.c.bf16 %v442, %v440
        %v631 = vpack.c.bf16 %v443, %v441
        %v632 = vpack.c.bf16 %v446, %v444
        %v633 = vpack.c.bf16 %v447, %v445
        %v634 = vpack.c.bf16 %v450, %v448
        %v635 = vpack.c.bf16 %v451, %v449
        %v636 = vpack.c.bf16 %v454, %v452
        %v637 = vpack.c.bf16 %v455, %v453
        %v638 = vpack.c.bf16 %v458, %v456
        %v639 = vpack.c.bf16 %v459, %v457
        %v640 = vpack.c.bf16 %v462, %v460
        %v641 = vpack.c.bf16 %v463, %v461
        %v642 = vpack.c.bf16 %v466, %v464
        %v643 = vpack.c.bf16 %v467, %v465
        %v644 = vpack.c.bf16 %v470, %v468
        %v645 = vpack.c.bf16 %v471, %v469
        %v646 = vpack.c.bf16 %v474, %v472
        %v647 = vpack.c.bf16 %v475, %v473
        %v648 = vpack.c.bf16 %v478, %v476
        %v649 = vpack.c.bf16 %v479, %v477
        %v650 = vpack.c.bf16 %v482, %v480
        %v651 = vpack.c.bf16 %v483, %v481
        %v652 = vpack.c.bf16 %v486, %v484
        %v653 = vpack.c.bf16 %v487, %v485
        %v654 = vpack.c.bf16 %v490, %v488
        %v655 = vpack.c.bf16 %v491, %v489
        %v656 = vpack.c.bf16 %v494, %v492
        %v657 = vpack.c.bf16 %v495, %v493
        %v658 = vpack.c.bf16 %v498, %v496
        %v659 = vpack.c.bf16 %v499, %v497
        %v660 = vpack.c.bf16 %v502, %v500
        %v661 = vpack.c.bf16 %v503, %v501
        %v662 = vpack.c.bf16 %v506, %v504
        %v663 = vpack.c.bf16 %v507, %v505
        %v664 = vpack.c.bf16 %v510, %v508
        %v665 = vpack.c.bf16 %v511, %v509
        %v666 = vpack.c.bf16 %v514, %v512
        %v667 = vpack.c.bf16 %v515, %v513
        %v668 = vpack.c.bf16 %v518, %v516
        %v669 = vpack.c.bf16 %v519, %v517
        %v670 = vpack.c.bf16 %v522, %v520
        %v671 = vpack.c.bf16 %v523, %v521
        %v672 = vpack.c.bf16 %v526, %v524
        %v673 = vpack.c.bf16 %v527, %v525
        %v674 = vpack.c.bf16 %v530, %v528
        %v675 = vpack.c.bf16 %v531, %v529
        %v676 = vpack.c.bf16 %v534, %v532
        %v677 = vpack.c.bf16 %v535, %v533
        %v678 = vpack.c.bf16 %v538, %v536
        %v679 = vpack.c.bf16 %v539, %v537
        %v680 = vpack.c.bf16 %v542, %v540
        %v681 = vpack.c.bf16 %v543, %v541
        %v682 = vpack.c.bf16 %v546, %v544
        %v683 = vpack.c.bf16 %v547, %v545
        %v684 = vpack.c.bf16 %v550, %v548
        %v685 = vpack.c.bf16 %v551, %v549
        %v686 = vpack.c.bf16 %v554, %v552
        %v687 = vpack.c.bf16 %v555, %v553
        %v688 = vpack.c.bf16 %v558, %v556
        %v689 = vpack.c.bf16 %v559, %v557
        %v690 = vpack.c.bf16 %v562, %v560
        %v691 = vpack.c.bf16 %v563, %v561
        %v692 = vld [vmem:[#allocation7] sm:$0xff]
        %v693 = vld [vmem:[#allocation7 + $0x8] sm:$0xff]
        %v694 = vld [vmem:[#allocation7 + $0x10] sm:$0xff]
        %v695 = vld [vmem:[#allocation7 + $0x18] sm:$0xff]
        %v696 = vld [vmem:[#allocation7 + $0x20] sm:$0xff]
        %v697 = vld [vmem:[#allocation7 + $0x28] sm:$0xff]
        %v698 = vld [vmem:[#allocation7 + $0x30] sm:$0xff]
        %v699 = vld [vmem:[#allocation7 + $0x38] sm:$0xff]
        %v700 = vld [vmem:[#allocation7 + $0x40] sm:$0xff]
        %v701 = vld [vmem:[#allocation7 + $0x48] sm:$0xff]
        %v702 = vld [vmem:[#allocation7 + $0x50] sm:$0xff]
        %v703 = vld [vmem:[#allocation7 + $0x58] sm:$0xff]
        %v704 = vld [vmem:[#allocation7 + $0x60] sm:$0xff]
        %v705 = vld [vmem:[#allocation7 + $0x68] sm:$0xff]
        %v706 = vld [vmem:[#allocation7 + $0x70] sm:$0xff]
        %v707 = vld [vmem:[#allocation7 + $0x78] sm:$0xff]
        %v708 = vld [vmem:[#allocation7 + $0x80] sm:$0xff]
        %v709 = vld [vmem:[#allocation7 + $0x88] sm:$0xff]
        %v710 = vld [vmem:[#allocation7 + $0x90] sm:$0xff]
        %v711 = vld [vmem:[#allocation7 + $0x98] sm:$0xff]
        %v712 = vld [vmem:[#allocation7 + $0xa0] sm:$0xff]
        %v713 = vld [vmem:[#allocation7 + $0xa8] sm:$0xff]
        %v714 = vld [vmem:[#allocation7 + $0xb0] sm:$0xff]
        %v715 = vld [vmem:[#allocation7 + $0xb8] sm:$0xff]
        %v716 = vld [vmem:[#allocation7 + $0xc0] sm:$0xff]
        %v717 = vld [vmem:[#allocation7 + $0xc8] sm:$0xff]
        %v718 = vld [vmem:[#allocation7 + $0xd0] sm:$0xff]
        %v719 = vld [vmem:[#allocation7 + $0xd8] sm:$0xff]
        %v720 = vld [vmem:[#allocation7 + $0xe0] sm:$0xff]
        %v721 = vld [vmem:[#allocation7 + $0xe8] sm:$0xff]
        %v722 = vld [vmem:[#allocation7 + $0xf0] sm:$0xff]
        %v723 = vld [vmem:[#allocation7 + $0xf8] sm:$0xff]
        %v724 = vld [vmem:[#allocation7 + $0x100] sm:$0xff]
        %v725 = vld [vmem:[#allocation7 + $0x108] sm:$0xff]
        %v726 = vld [vmem:[#allocation7 + $0x110] sm:$0xff]
        %v727 = vld [vmem:[#allocation7 + $0x118] sm:$0xff]
        %v728 = vld [vmem:[#allocation7 + $0x120] sm:$0xff]
        %v729 = vld [vmem:[#allocation7 + $0x128] sm:$0xff]
        %v730 = vld [vmem:[#allocation7 + $0x130] sm:$0xff]
        %v731 = vld [vmem:[#allocation7 + $0x138] sm:$0xff]
        %v732 = vld [vmem:[#allocation7 + $0x140] sm:$0xff]
        %v733 = vld [vmem:[#allocation7 + $0x148] sm:$0xff]
        %v734 = vld [vmem:[#allocation7 + $0x150] sm:$0xff]
        %v735 = vld [vmem:[#allocation7 + $0x158] sm:$0xff]
        %v736 = vld [vmem:[#allocation7 + $0x160] sm:$0xff]
        %v737 = vld [vmem:[#allocation7 + $0x168] sm:$0xff]
        %v738 = vld [vmem:[#allocation7 + $0x170] sm:$0xff]
        %v739 = vld [vmem:[#allocation7 + $0x178] sm:$0xff]
        %v740 = vld [vmem:[#allocation7 + $0x180] sm:$0xff]
        %v741 = vld [vmem:[#allocation7 + $0x188] sm:$0xff]
        %v742 = vld [vmem:[#allocation7 + $0x190] sm:$0xff]
        %v743 = vld [vmem:[#allocation7 + $0x198] sm:$0xff]
        %v744 = vld [vmem:[#allocation7 + $0x1a0] sm:$0xff]
        %v745 = vld [vmem:[#allocation7 + $0x1a8] sm:$0xff]
        %v746 = vld [vmem:[#allocation7 + $0x1b0] sm:$0xff]
        %v747 = vld [vmem:[#allocation7 + $0x1b8] sm:$0xff]
        %v748 = vld [vmem:[#allocation7 + $0x1c0] sm:$0xff]
        %v749 = vld [vmem:[#allocation7 + $0x1c8] sm:$0xff]
        %v750 = vld [vmem:[#allocation7 + $0x1d0] sm:$0xff]
        %v751 = vld [vmem:[#allocation7 + $0x1d8] sm:$0xff]
        %v752 = vld [vmem:[#allocation7 + $0x1e0] sm:$0xff]
        %v753 = vld [vmem:[#allocation7 + $0x1e8] sm:$0xff]
        %v754 = vld [vmem:[#allocation7 + $0x1f0] sm:$0xff]
        %v755 = vld [vmem:[#allocation7 + $0x1f8] sm:$0xff]
        %v820 = vunpack.c.l.b16 %v692
        %v821 = vunpack.c.h.b16 %v692
        %v822 = vunpack.c.l.b16 %v693
        %v823 = vunpack.c.h.b16 %v693
        %v824 = vunpack.c.l.b16 %v694
        %v825 = vunpack.c.h.b16 %v694
        %v826 = vunpack.c.l.b16 %v695
        %v827 = vunpack.c.h.b16 %v695
        %v828 = vunpack.c.l.b16 %v696
        %v829 = vunpack.c.h.b16 %v696
        %v830 = vunpack.c.l.b16 %v697
        %v831 = vunpack.c.h.b16 %v697
        %v832 = vunpack.c.l.b16 %v698
        %v833 = vunpack.c.h.b16 %v698
        %v834 = vunpack.c.l.b16 %v699
        %v835 = vunpack.c.h.b16 %v699
        %v836 = vunpack.c.l.b16 %v700
        %v837 = vunpack.c.h.b16 %v700
        %v838 = vunpack.c.l.b16 %v701
        %v839 = vunpack.c.h.b16 %v701
        %v840 = vunpack.c.l.b16 %v702
        %v841 = vunpack.c.h.b16 %v702
        %v842 = vunpack.c.l.b16 %v703
        %v843 = vunpack.c.h.b16 %v703
        %v844 = vunpack.c.l.b16 %v704
        %v845 = vunpack.c.h.b16 %v704
        %v846 = vunpack.c.l.b16 %v705
        %v847 = vunpack.c.h.b16 %v705
        %v848 = vunpack.c.l.b16 %v706
        %v849 = vunpack.c.h.b16 %v706
        %v850 = vunpack.c.l.b16 %v707
        %v851 = vunpack.c.h.b16 %v707
        %v852 = vunpack.c.l.b16 %v708
        %v853 = vunpack.c.h.b16 %v708
        %v854 = vunpack.c.l.b16 %v709
        %v855 = vunpack.c.h.b16 %v709
        %v856 = vunpack.c.l.b16 %v710
        %v857 = vunpack.c.h.b16 %v710
        %v858 = vunpack.c.l.b16 %v711
        %v859 = vunpack.c.h.b16 %v711
        %v860 = vunpack.c.l.b16 %v712
        %v861 = vunpack.c.h.b16 %v712
        %v862 = vunpack.c.l.b16 %v713
        %v863 = vunpack.c.h.b16 %v713
        %v864 = vunpack.c.l.b16 %v714
        %v865 = vunpack.c.h.b16 %v714
        %v866 = vunpack.c.l.b16 %v715
        %v867 = vunpack.c.h.b16 %v715
        %v868 = vunpack.c.l.b16 %v716
        %v869 = vunpack.c.h.b16 %v716
        %v870 = vunpack.c.l.b16 %v717
        %v871 = vunpack.c.h.b16 %v717
        %v872 = vunpack.c.l.b16 %v718
        %v873 = vunpack.c.h.b16 %v718
        %v874 = vunpack.c.l.b16 %v719
        %v875 = vunpack.c.h.b16 %v719
        %v876 = vunpack.c.l.b16 %v720
        %v877 = vunpack.c.h.b16 %v720
        %v878 = vunpack.c.l.b16 %v721
        %v879 = vunpack.c.h.b16 %v721
        %v880 = vunpack.c.l.b16 %v722
        %v881 = vunpack.c.h.b16 %v722
        %v882 = vunpack.c.l.b16 %v723
        %v883 = vunpack.c.h.b16 %v723
        %v884 = vunpack.c.l.b16 %v724
        %v885 = vunpack.c.h.b16 %v724
        %v886 = vunpack.c.l.b16 %v725
        %v887 = vunpack.c.h.b16 %v725
        %v888 = vunpack.c.l.b16 %v726
        %v889 = vunpack.c.h.b16 %v726
        %v890 = vunpack.c.l.b16 %v727
        %v891 = vunpack.c.h.b16 %v727
        %v892 = vunpack.c.l.b16 %v728
        %v893 = vunpack.c.h.b16 %v728
        %v894 = vunpack.c.l.b16 %v729
        %v895 = vunpack.c.h.b16 %v729
        %v896 = vunpack.c.l.b16 %v730
        %v897 = vunpack.c.h.b16 %v730
        %v898 = vunpack.c.l.b16 %v731
        %v899 = vunpack.c.h.b16 %v731
        %v900 = vunpack.c.l.b16 %v732
        %v901 = vunpack.c.h.b16 %v732
        %v902 = vunpack.c.l.b16 %v733
        %v903 = vunpack.c.h.b16 %v733
        %v904 = vunpack.c.l.b16 %v734
        %v905 = vunpack.c.h.b16 %v734
        %v906 = vunpack.c.l.b16 %v735
        %v907 = vunpack.c.h.b16 %v735
        %v908 = vunpack.c.l.b16 %v736
        %v909 = vunpack.c.h.b16 %v736
        %v910 = vunpack.c.l.b16 %v737
        %v911 = vunpack.c.h.b16 %v737
        %v912 = vunpack.c.l.b16 %v738
        %v913 = vunpack.c.h.b16 %v738
        %v914 = vunpack.c.l.b16 %v739
        %v915 = vunpack.c.h.b16 %v739
        %v916 = vunpack.c.l.b16 %v740
        %v917 = vunpack.c.h.b16 %v740
        %v918 = vunpack.c.l.b16 %v741
        %v919 = vunpack.c.h.b16 %v741
        %v920 = vunpack.c.l.b16 %v742
        %v921 = vunpack.c.h.b16 %v742
        %v922 = vunpack.c.l.b16 %v743
        %v923 = vunpack.c.h.b16 %v743
        %v924 = vunpack.c.l.b16 %v744
        %v925 = vunpack.c.h.b16 %v744
        %v926 = vunpack.c.l.b16 %v745
        %v927 = vunpack.c.h.b16 %v745
        %v928 = vunpack.c.l.b16 %v746
        %v929 = vunpack.c.h.b16 %v746
        %v930 = vunpack.c.l.b16 %v747
        %v931 = vunpack.c.h.b16 %v747
        %v932 = vunpack.c.l.b16 %v748
        %v933 = vunpack.c.h.b16 %v748
        %v934 = vunpack.c.l.b16 %v749
        %v935 = vunpack.c.h.b16 %v749
        %v936 = vunpack.c.l.b16 %v750
        %v937 = vunpack.c.h.b16 %v750
        %v938 = vunpack.c.l.b16 %v751
        %v939 = vunpack.c.h.b16 %v751
        %v940 = vunpack.c.l.b16 %v752
        %v941 = vunpack.c.h.b16 %v752
        %v942 = vunpack.c.l.b16 %v753
        %v943 = vunpack.c.h.b16 %v753
        %v944 = vunpack.c.l.b16 %v754
        %v945 = vunpack.c.h.b16 %v754
        %v946 = vunpack.c.l.b16 %v755
        %v947 = vunpack.c.h.b16 %v755
        %v948 = vpack.c.b16 %v828, %v820
        %v949 = vpack.c.b16 %v829, %v821
        %v950 = vpack.c.b16 %v830, %v822
        %v951 = vpack.c.b16 %v831, %v823
        %v952 = vpack.c.b16 %v832, %v824
        %v953 = vpack.c.b16 %v833, %v825
        %v954 = vpack.c.b16 %v834, %v826
        %v955 = vpack.c.b16 %v835, %v827
        %v956 = vpack.c.b16 %v844, %v836
        %v957 = vpack.c.b16 %v845, %v837
        %v958 = vpack.c.b16 %v846, %v838
        %v959 = vpack.c.b16 %v847, %v839
        %v960 = vpack.c.b16 %v848, %v840
        %v961 = vpack.c.b16 %v849, %v841
        %v962 = vpack.c.b16 %v850, %v842
        %v963 = vpack.c.b16 %v851, %v843
        %v964 = vpack.c.b16 %v860, %v852
        %v965 = vpack.c.b16 %v861, %v853
        %v966 = vpack.c.b16 %v862, %v854
        %v967 = vpack.c.b16 %v863, %v855
        %v968 = vpack.c.b16 %v864, %v856
        %v969 = vpack.c.b16 %v865, %v857
        %v970 = vpack.c.b16 %v866, %v858
        %v971 = vpack.c.b16 %v867, %v859
        %v972 = vpack.c.b16 %v876, %v868
        %v973 = vpack.c.b16 %v877, %v869
        %v974 = vpack.c.b16 %v878, %v870
        %v975 = vpack.c.b16 %v879, %v871
        %v976 = vpack.c.b16 %v880, %v872
        %v977 = vpack.c.b16 %v881, %v873
        %v978 = vpack.c.b16 %v882, %v874
        %v979 = vpack.c.b16 %v883, %v875
        %v980 = vpack.c.b16 %v892, %v884
        %v981 = vpack.c.b16 %v893, %v885
        %v982 = vpack.c.b16 %v894, %v886
        %v983 = vpack.c.b16 %v895, %v887
        %v984 = vpack.c.b16 %v896, %v888
        %v985 = vpack.c.b16 %v897, %v889
        %v986 = vpack.c.b16 %v898, %v890
        %v987 = vpack.c.b16 %v899, %v891
        %v988 = vpack.c.b16 %v908, %v900
        %v989 = vpack.c.b16 %v909, %v901
        %v990 = vpack.c.b16 %v910, %v902
        %v991 = vpack.c.b16 %v911, %v903
        %v992 = vpack.c.b16 %v912, %v904
        %v993 = vpack.c.b16 %v913, %v905
        %v994 = vpack.c.b16 %v914, %v906
        %v995 = vpack.c.b16 %v915, %v907
        %v996 = vpack.c.b16 %v924, %v916
        %v997 = vpack.c.b16 %v925, %v917
        %v998 = vpack.c.b16 %v926, %v918
        %v999 = vpack.c.b16 %v927, %v919
        %v1000 = vpack.c.b16 %v928, %v920
        %v1001 = vpack.c.b16 %v929, %v921
        %v1002 = vpack.c.b16 %v930, %v922
        %v1003 = vpack.c.b16 %v931, %v923
        %v1004 = vpack.c.b16 %v940, %v932
        %v1005 = vpack.c.b16 %v941, %v933
        %v1006 = vpack.c.b16 %v942, %v934
        %v1007 = vpack.c.b16 %v943, %v935
        %v1008 = vpack.c.b16 %v944, %v936
        %v1009 = vpack.c.b16 %v945, %v937
        %v1010 = vpack.c.b16 %v946, %v938
        %v1011 = vpack.c.b16 %v947, %v939
        %1076 = vmatprep.subr.bf16.mxu0 %v565
        %1077 = vmatpush1.bf16.msra.mxu0 %v564
        %1078 = vmatprep.subr.bf16.mxu0 %v567
        %1079 = vmatpush1.bf16.msra.mxu0 %v566
        %1080 = vmatprep.subr.bf16.mxu0 %v569
        %1081 = vmatpush1.bf16.msra.mxu0 %v568
        %1082 = vmatprep.subr.bf16.mxu0 %v571
        %1083 = vmatpush1.bf16.msra.mxu0 %v570
        %1084 = vmatprep.subr.bf16.mxu0 %v573
        %1085 = vmatpush1.bf16.msra.mxu0 %v572
        %1086 = vmatprep.subr.bf16.mxu0 %v575
        %1087 = vmatpush1.bf16.msra.mxu0 %v574
        %1088 = vmatprep.subr.bf16.mxu0 %v577
        %1089 = vmatpush1.bf16.msra.mxu0 %v576
        %1090 = vmatprep.subr.bf16.mxu0 %v579
        %1091 = vmatpush1.bf16.msra.mxu0 %v578
        %1092 = vmatprep.subr.bf16.mxu0 %v581
        %1093 = vmatpush1.bf16.msra.mxu0 %v580
        %1094 = vmatprep.subr.bf16.mxu0 %v583
        %1095 = vmatpush1.bf16.msra.mxu0 %v582
        %1096 = vmatprep.subr.bf16.mxu0 %v585
        %1097 = vmatpush1.bf16.msra.mxu0 %v584
        %1098 = vmatprep.subr.bf16.mxu0 %v587
        %1099 = vmatpush1.bf16.msra.mxu0 %v586
        %1100 = vmatprep.subr.bf16.mxu0 %v589
        %1101 = vmatpush1.bf16.msra.mxu0 %v588
        %1102 = vmatprep.subr.bf16.mxu0 %v591
        %1103 = vmatpush1.bf16.msra.mxu0 %v590
        %1104 = vmatprep.subr.bf16.mxu0 %v593
        %1105 = vmatpush1.bf16.msra.mxu0 %v592
        %1106 = vmatprep.subr.bf16.mxu0 %v595
        %1107 = vmatpush1.bf16.msra.mxu0 %v594
        %1108 = vmatprep.mubr.bf16.mxu0 %v949
        %1109 = vmatmul.mubr.bf16.gmra.mrb[0].mxu0 %v948
        %v1110 = vpop.f32.mrb[0].mxu0
        %v1111 = vadd.f32 0.0, %v1110
        %v1112 = vpop.f32.mrb[0].mxu0
        %v1113 = vadd.f32 0.0, %v1112
        %v1114 = vpop.f32.mrb[0].mxu0
        %v1115 = vadd.f32 0.0, %v1114
        %v1116 = vpop.f32.mrb[0].mxu0
        %v1117 = vadd.f32 0.0, %v1116
        %1118 = vmatprep.mubr.bf16.mxu0 %v957
        %1119 = vmatmul.mubr.bf16.gmra.mrb[0].mxu0 %v956
        %v1120 = vpop.f32.mrb[0].mxu0
        %v1121 = vadd.f32 0.0, %v1120
        %v1122 = vpop.f32.mrb[0].mxu0
        %v1123 = vadd.f32 0.0, %v1122
        %v1124 = vpop.f32.mrb[0].mxu0
        %v1125 = vadd.f32 0.0, %v1124
        %v1126 = vpop.f32.mrb[0].mxu0
        %v1127 = vadd.f32 0.0, %v1126
        %1128 = vmatprep.mubr.bf16.mxu0 %v965
        %1129 = vmatmul.mubr.bf16.gmra.mrb[0].mxu0 %v964
        %v1130 = vpop.f32.mrb[0].mxu0
        %v1131 = vadd.f32 0.0, %v1130
        %v1132 = vpop.f32.mrb[0].mxu0
        %v1133 = vadd.f32 0.0, %v1132
        %v1134 = vpop.f32.mrb[0].mxu0
        %v1135 = vadd.f32 0.0, %v1134
        %v1136 = vpop.f32.mrb[0].mxu0
        %v1137 = vadd.f32 0.0, %v1136
        %1138 = vmatprep.mubr.bf16.mxu0 %v973
        %1139 = vmatmul.mubr.bf16.gmra.mrb[0].mxu0 %v972
        %v1140 = vpop.f32.mrb[0].mxu0
        %v1141 = vadd.f32 0.0, %v1140
        %v1142 = vpop.f32.mrb[0].mxu0
        %v1143 = vadd.f32 0.0, %v1142
        %v1144 = vpop.f32.mrb[0].mxu0
        %v1145 = vadd.f32 0.0, %v1144
        %v1146 = vpop.f32.mrb[0].mxu0
        %v1147 = vadd.f32 0.0, %v1146
        %1148 = vmatprep.mubr.bf16.mxu0 %v981
        %1149 = vmatmul.mubr.bf16.gmra.mrb[0].mxu0 %v980
        %v1150 = vpop.f32.mrb[0].mxu0
        %v1151 = vadd.f32 0.0, %v1150
        %v1152 = vpop.f32.mrb[0].mxu0
        %v1153 = vadd.f32 0.0, %v1152
        %v1154 = vpop.f32.mrb[0].mxu0
        %v1155 = vadd.f32 0.0, %v1154
        %v1156 = vpop.f32.mrb[0].mxu0
        %v1157 = vadd.f32 0.0, %v1156
        %1158 = vmatprep.mubr.bf16.mxu0 %v989
        %1159 = vmatmul.mubr.bf16.gmra.mrb[0].mxu0 %v988
        %v1160 = vpop.f32.mrb[0].mxu0
        %v1161 = vadd.f32 0.0, %v1160
        %v1162 = vpop.f32.mrb[0].mxu0
        %v1163 = vadd.f32 0.0, %v1162
        %v1164 = vpop.f32.mrb[0].mxu0
        %v1165 = vadd.f32 0.0, %v1164
        %v1166 = vpop.f32.mrb[0].mxu0
        %v1167 = vadd.f32 0.0, %v1166
        %1168 = vmatprep.mubr.bf16.mxu0 %v997
        %1169 = vmatmul.mubr.bf16.gmra.mrb[0].mxu0 %v996
        %v1170 = vpop.f32.mrb[0].mxu0
        %v1171 = vadd.f32 0.0, %v1170
        %v1172 = vpop.f32.mrb[0].mxu0
        %v1173 = vadd.f32 0.0, %v1172
        %v1174 = vpop.f32.mrb[0].mxu0
        %v1175 = vadd.f32 0.0, %v1174
        %v1176 = vpop.f32.mrb[0].mxu0
        %v1177 = vadd.f32 0.0, %v1176
        %1178 = vmatprep.mubr.bf16.mxu0 %v1005
        %1179 = vmatmul.mubr.bf16.gmra.mrb[0].mxu0 %v1004
        %v1180 = vpop.f32.mrb[0].mxu0
        %v1181 = vadd.f32 0.0, %v1180
        %v1182 = vpop.f32.mrb[0].mxu0
        %v1183 = vadd.f32 0.0, %v1182
        %v1184 = vpop.f32.mrb[0].mxu0
        %v1185 = vadd.f32 0.0, %v1184
        %v1186 = vpop.f32.mrb[0].mxu0
        %v1187 = vadd.f32 0.0, %v1186
        %1188 = vdwg.mxu0
        %1189 = vmatprep.subr.bf16.mxu0 %v597
        %1190 = vmatpush1.bf16.msra.mxu0 %v596
        %1191 = vmatprep.subr.bf16.mxu0 %v599
        %1192 = vmatpush1.bf16.msra.mxu0 %v598
        %1193 = vmatprep.subr.bf16.mxu0 %v601
        %1194 = vmatpush1.bf16.msra.mxu0 %v600
        %1195 = vmatprep.subr.bf16.mxu0 %v603
        %1196 = vmatpush1.bf16.msra.mxu0 %v602
        %1197 = vmatprep.subr.bf16.mxu0 %v605
        %1198 = vmatpush1.bf16.msra.mxu0 %v604
        %1199 = vmatprep.subr.bf16.mxu0 %v607
        %1200 = vmatpush1.bf16.msra.mxu0 %v606
        %1201 = vmatprep.subr.bf16.mxu0 %v609
        %1202 = vmatpush1.bf16.msra.mxu0 %v608
        %1203 = vmatprep.subr.bf16.mxu0 %v611
        %1204 = vmatpush1.bf16.msra.mxu0 %v610
        %1205 = vmatprep.subr.bf16.mxu0 %v613
        %1206 = vmatpush1.bf16.msra.mxu0 %v612
        %1207 = vmatprep.subr.bf16.mxu0 %v615
        %1208 = vmatpush1.bf16.msra.mxu0 %v614
        %1209 = vmatprep.subr.bf16.mxu0 %v617
        %1210 = vmatpush1.bf16.msra.mxu0 %v616
        %1211 = vmatprep.subr.bf16.mxu0 %v619
        %1212 = vmatpush1.bf16.msra.mxu0 %v618
        %1213 = vmatprep.subr.bf16.mxu0 %v621
        %1214 = vmatpush1.bf16.msra.mxu0 %v620
        %1215 = vmatprep.subr.bf16.mxu0 %v623
        %1216 = vmatpush1.bf16.msra.mxu0 %v622
        %1217 = vmatprep.subr.bf16.mxu0 %v625
        %1218 = vmatpush1.bf16.msra.mxu0 %v624
        %1219 = vmatprep.subr.bf16.mxu0 %v627
        %1220 = vmatpush1.bf16.msra.mxu0 %v626
        %1221 = vmatprep.mubr.bf16.mxu0 %v951
        %1222 = vmatmul.mubr.bf16.gmra.mrb[0].mxu0 %v950
        %v1223 = vpop.f32.mrb[0].mxu0
        %v1224 = vadd.f32 %v1111, %v1223
        %v1225 = vpop.f32.mrb[0].mxu0
        %v1226 = vadd.f32 %v1113, %v1225
        %v1227 = vpop.f32.mrb[0].mxu0
        %v1228 = vadd.f32 %v1115, %v1227
        %v1229 = vpop.f32.mrb[0].mxu0
        %v1230 = vadd.f32 %v1117, %v1229
        %1231 = vmatprep.mubr.bf16.mxu0 %v959
        %1232 = vmatmul.mubr.bf16.gmra.mrb[0].mxu0 %v958
        %v1233 = vpop.f32.mrb[0].mxu0
        %v1234 = vadd.f32 %v1121, %v1233
        %v1235 = vpop.f32.mrb[0].mxu0
        %v1236 = vadd.f32 %v1123, %v1235
        %v1237 = vpop.f32.mrb[0].mxu0
        %v1238 = vadd.f32 %v1125, %v1237
        %v1239 = vpop.f32.mrb[0].mxu0
        %v1240 = vadd.f32 %v1127, %v1239
        %1241 = vmatprep.mubr.bf16.mxu0 %v967
        %1242 = vmatmul.mubr.bf16.gmra.mrb[0].mxu0 %v966
        %v1243 = vpop.f32.mrb[0].mxu0
        %v1244 = vadd.f32 %v1131, %v1243
        %v1245 = vpop.f32.mrb[0].mxu0
        %v1246 = vadd.f32 %v1133, %v1245
        %v1247 = vpop.f32.mrb[0].mxu0
        %v1248 = vadd.f32 %v1135, %v1247
        %v1249 = vpop.f32.mrb[0].mxu0
        %v1250 = vadd.f32 %v1137, %v1249
        %1251 = vmatprep.mubr.bf16.mxu0 %v975
        %1252 = vmatmul.mubr.bf16.gmra.mrb[0].mxu0 %v974
        %v1253 = vpop.f32.mrb[0].mxu0
        %v1254 = vadd.f32 %v1141, %v1253
        %v1255 = vpop.f32.mrb[0].mxu0
        %v1256 = vadd.f32 %v1143, %v1255
        %v1257 = vpop.f32.mrb[0].mxu0
        %v1258 = vadd.f32 %v1145, %v1257
        %v1259 = vpop.f32.mrb[0].mxu0
        %v1260 = vadd.f32 %v1147, %v1259
        %1261 = vmatprep.mubr.bf16.mxu0 %v983
        %1262 = vmatmul.mubr.bf16.gmra.mrb[0].mxu0 %v982
        %v1263 = vpop.f32.mrb[0].mxu0
        %v1264 = vadd.f32 %v1151, %v1263
        %v1265 = vpop.f32.mrb[0].mxu0
        %v1266 = vadd.f32 %v1153, %v1265
        %v1267 = vpop.f32.mrb[0].mxu0
        %v1268 = vadd.f32 %v1155, %v1267
        %v1269 = vpop.f32.mrb[0].mxu0
        %v1270 = vadd.f32 %v1157, %v1269
        %1271 = vmatprep.mubr.bf16.mxu0 %v991
        %1272 = vmatmul.mubr.bf16.gmra.mrb[0].mxu0 %v990
        %v1273 = vpop.f32.mrb[0].mxu0
        %v1274 = vadd.f32 %v1161, %v1273
        %v1275 = vpop.f32.mrb[0].mxu0
        %v1276 = vadd.f32 %v1163, %v1275
        %v1277 = vpop.f32.mrb[0].mxu0
        %v1278 = vadd.f32 %v1165, %v1277
        %v1279 = vpop.f32.mrb[0].mxu0
        %v1280 = vadd.f32 %v1167, %v1279
        %1281 = vmatprep.mubr.bf16.mxu0 %v999
        %1282 = vmatmul.mubr.bf16.gmra.mrb[0].mxu0 %v998
        %v1283 = vpop.f32.mrb[0].mxu0
        %v1284 = vadd.f32 %v1171, %v1283
        %v1285 = vpop.f32.mrb[0].mxu0
        %v1286 = vadd.f32 %v1173, %v1285
        %v1287 = vpop.f32.mrb[0].mxu0
        %v1288 = vadd.f32 %v1175, %v1287
        %v1289 = vpop.f32.mrb[0].mxu0
        %v1290 = vadd.f32 %v1177, %v1289
        %1291 = vmatprep.mubr.bf16.mxu0 %v1007
        %1292 = vmatmul.mubr.bf16.gmra.mrb[0].mxu0 %v1006
        %v1293 = vpop.f32.mrb[0].mxu0
        %v1294 = vadd.f32 %v1181, %v1293
        %v1295 = vpop.f32.mrb[0].mxu0
        %v1296 = vadd.f32 %v1183, %v1295
        %v1297 = vpop.f32.mrb[0].mxu0
        %v1298 = vadd.f32 %v1185, %v1297
        %v1299 = vpop.f32.mrb[0].mxu0
        %v1300 = vadd.f32 %v1187, %v1299
        %1301 = vdwg.mxu0
        %1302 = vmatprep.subr.bf16.mxu0 %v629
        %1303 = vmatpush1.bf16.msra.mxu0 %v628
        %1304 = vmatprep.subr.bf16.mxu0 %v631
        %1305 = vmatpush1.bf16.msra.mxu0 %v630
        %1306 = vmatprep.subr.bf16.mxu0 %v633
        %1307 = vmatpush1.bf16.msra.mxu0 %v632
        %1308 = vmatprep.subr.bf16.mxu0 %v635
        %1309 = vmatpush1.bf16.msra.mxu0 %v634
        %1310 = vmatprep.subr.bf16.mxu0 %v637
        %1311 = vmatpush1.bf16.msra.mxu0 %v636
        %1312 = vmatprep.subr.bf16.mxu0 %v639
        %1313 = vmatpush1.bf16.msra.mxu0 %v638
        %1314 = vmatprep.subr.bf16.mxu0 %v641
        %1315 = vmatpush1.bf16.msra.mxu0 %v640
        %1316 = vmatprep.subr.bf16.mxu0 %v643
        %1317 = vmatpush1.bf16.msra.mxu0 %v642
        %1318 = vmatprep.subr.bf16.mxu0 %v645
        %1319 = vmatpush1.bf16.msra.mxu0 %v644
        %1320 = vmatprep.subr.bf16.mxu0 %v647
        %1321 = vmatpush1.bf16.msra.mxu0 %v646
        %1322 = vmatprep.subr.bf16.mxu0 %v649
        %1323 = vmatpush1.bf16.msra.mxu0 %v648
        %1324 = vmatprep.subr.bf16.mxu0 %v651
        %1325 = vmatpush1.bf16.msra.mxu0 %v650
        %1326 = vmatprep.subr.bf16.mxu0 %v653
        %1327 = vmatpush1.bf16.msra.mxu0 %v652
        %1328 = vmatprep.subr.bf16.mxu0 %v655
        %1329 = vmatpush1.bf16.msra.mxu0 %v654
        %1330 = vmatprep.subr.bf16.mxu0 %v657
        %1331 = vmatpush1.bf16.msra.mxu0 %v656
        %1332 = vmatprep.subr.bf16.mxu0 %v659
        %1333 = vmatpush1.bf16.msra.mxu0 %v658
        %1334 = vmatprep.mubr.bf16.mxu0 %v953
        %1335 = vmatmul.mubr.bf16.gmra.mrb[0].mxu0 %v952
        %v1336 = vpop.f32.mrb[0].mxu0
        %v1337 = vadd.f32 %v1224, %v1336
        %v1338 = vpop.f32.mrb[0].mxu0
        %v1339 = vadd.f32 %v1226, %v1338
        %v1340 = vpop.f32.mrb[0].mxu0
        %v1341 = vadd.f32 %v1228, %v1340
        %v1342 = vpop.f32.mrb[0].mxu0
        %v1343 = vadd.f32 %v1230, %v1342
        %1344 = vmatprep.mubr.bf16.mxu0 %v961
        %1345 = vmatmul.mubr.bf16.gmra.mrb[0].mxu0 %v960
        %v1346 = vpop.f32.mrb[0].mxu0
        %v1347 = vadd.f32 %v1234, %v1346
        %v1348 = vpop.f32.mrb[0].mxu0
        %v1349 = vadd.f32 %v1236, %v1348
        %v1350 = vpop.f32.mrb[0].mxu0
        %v1351 = vadd.f32 %v1238, %v1350
        %v1352 = vpop.f32.mrb[0].mxu0
        %v1353 = vadd.f32 %v1240, %v1352
        %1354 = vmatprep.mubr.bf16.mxu0 %v969
        %1355 = vmatmul.mubr.bf16.gmra.mrb[0].mxu0 %v968
        %v1356 = vpop.f32.mrb[0].mxu0
        %v1357 = vadd.f32 %v1244, %v1356
        %v1358 = vpop.f32.mrb[0].mxu0
        %v1359 = vadd.f32 %v1246, %v1358
        %v1360 = vpop.f32.mrb[0].mxu0
        %v1361 = vadd.f32 %v1248, %v1360
        %v1362 = vpop.f32.mrb[0].mxu0
        %v1363 = vadd.f32 %v1250, %v1362
        %1364 = vmatprep.mubr.bf16.mxu0 %v977
        %1365 = vmatmul.mubr.bf16.gmra.mrb[0].mxu0 %v976
        %v1366 = vpop.f32.mrb[0].mxu0
        %v1367 = vadd.f32 %v1254, %v1366
        %v1368 = vpop.f32.mrb[0].mxu0
        %v1369 = vadd.f32 %v1256, %v1368
        %v1370 = vpop.f32.mrb[0].mxu0
        %v1371 = vadd.f32 %v1258, %v1370
        %v1372 = vpop.f32.mrb[0].mxu0
        %v1373 = vadd.f32 %v1260, %v1372
        %1374 = vmatprep.mubr.bf16.mxu0 %v985
        %1375 = vmatmul.mubr.bf16.gmra.mrb[0].mxu0 %v984
        %v1376 = vpop.f32.mrb[0].mxu0
        %v1377 = vadd.f32 %v1264, %v1376
        %v1378 = vpop.f32.mrb[0].mxu0
        %v1379 = vadd.f32 %v1266, %v1378
        %v1380 = vpop.f32.mrb[0].mxu0
        %v1381 = vadd.f32 %v1268, %v1380
        %v1382 = vpop.f32.mrb[0].mxu0
        %v1383 = vadd.f32 %v1270, %v1382
        %1384 = vmatprep.mubr.bf16.mxu0 %v993
        %1385 = vmatmul.mubr.bf16.gmra.mrb[0].mxu0 %v992
        %v1386 = vpop.f32.mrb[0].mxu0
        %v1387 = vadd.f32 %v1274, %v1386
        %v1388 = vpop.f32.mrb[0].mxu0
        %v1389 = vadd.f32 %v1276, %v1388
        %v1390 = vpop.f32.mrb[0].mxu0
        %v1391 = vadd.f32 %v1278, %v1390
        %v1392 = vpop.f32.mrb[0].mxu0
        %v1393 = vadd.f32 %v1280, %v1392
        %1394 = vmatprep.mubr.bf16.mxu0 %v1001
        %1395 = vmatmul.mubr.bf16.gmra.mrb[0].mxu0 %v1000
        %v1396 = vpop.f32.mrb[0].mxu0
        %v1397 = vadd.f32 %v1284, %v1396
        %v1398 = vpop.f32.mrb[0].mxu0
        %v1399 = vadd.f32 %v1286, %v1398
        %v1400 = vpop.f32.mrb[0].mxu0
        %v1401 = vadd.f32 %v1288, %v1400
        %v1402 = vpop.f32.mrb[0].mxu0
        %v1403 = vadd.f32 %v1290, %v1402
        %1404 = vmatprep.mubr.bf16.mxu0 %v1009
        %1405 = vmatmul.mubr.bf16.gmra.mrb[0].mxu0 %v1008
        %v1406 = vpop.f32.mrb[0].mxu0
        %v1407 = vadd.f32 %v1294, %v1406
        %v1408 = vpop.f32.mrb[0].mxu0
        %v1409 = vadd.f32 %v1296, %v1408
        %v1410 = vpop.f32.mrb[0].mxu0
        %v1411 = vadd.f32 %v1298, %v1410
        %v1412 = vpop.f32.mrb[0].mxu0
        %v1413 = vadd.f32 %v1300, %v1412
        %1414 = vdwg.mxu0
        %1415 = vmatprep.subr.bf16.mxu0 %v661
        %1416 = vmatpush1.bf16.msra.mxu0 %v660
        %1417 = vmatprep.subr.bf16.mxu0 %v663
        %1418 = vmatpush1.bf16.msra.mxu0 %v662
        %1419 = vmatprep.subr.bf16.mxu0 %v665
        %1420 = vmatpush1.bf16.msra.mxu0 %v664
        %1421 = vmatprep.subr.bf16.mxu0 %v667
        %1422 = vmatpush1.bf16.msra.mxu0 %v666
        %1423 = vmatprep.subr.bf16.mxu0 %v669
        %1424 = vmatpush1.bf16.msra.mxu0 %v668
        %1425 = vmatprep.subr.bf16.mxu0 %v671
        %1426 = vmatpush1.bf16.msra.mxu0 %v670
        %1427 = vmatprep.subr.bf16.mxu0 %v673
        %1428 = vmatpush1.bf16.msra.mxu0 %v672
        %1429 = vmatprep.subr.bf16.mxu0 %v675
        %1430 = vmatpush1.bf16.msra.mxu0 %v674
        %1431 = vmatprep.subr.bf16.mxu0 %v677
        %1432 = vmatpush1.bf16.msra.mxu0 %v676
        %1433 = vmatprep.subr.bf16.mxu0 %v679
        %1434 = vmatpush1.bf16.msra.mxu0 %v678
        %1435 = vmatprep.subr.bf16.mxu0 %v681
        %1436 = vmatpush1.bf16.msra.mxu0 %v680
        %1437 = vmatprep.subr.bf16.mxu0 %v683
        %1438 = vmatpush1.bf16.msra.mxu0 %v682
        %1439 = vmatprep.subr.bf16.mxu0 %v685
        %1440 = vmatpush1.bf16.msra.mxu0 %v684
        %1441 = vmatprep.subr.bf16.mxu0 %v687
        %1442 = vmatpush1.bf16.msra.mxu0 %v686
        %1443 = vmatprep.subr.bf16.mxu0 %v689
        %1444 = vmatpush1.bf16.msra.mxu0 %v688
        %1445 = vmatprep.subr.bf16.mxu0 %v691
        %1446 = vmatpush1.bf16.msra.mxu0 %v690
        %1447 = vmatprep.mubr.bf16.mxu0 %v955
        %1448 = vmatmul.mubr.bf16.gmra.mrb[0].mxu0 %v954
        %v1449 = vpop.f32.mrb[0].mxu0
        %v1450 = vadd.f32 %v1337, %v1449
        %v1451 = vpop.f32.mrb[0].mxu0
        %v1452 = vadd.f32 %v1339, %v1451
        %v1453 = vpop.f32.mrb[0].mxu0
        %v1454 = vadd.f32 %v1341, %v1453
        %v1455 = vpop.f32.mrb[0].mxu0
        %v1456 = vadd.f32 %v1343, %v1455
        %1457 = vmatprep.mubr.bf16.mxu0 %v963
        %1458 = vmatmul.mubr.bf16.gmra.mrb[0].mxu0 %v962
        %v1459 = vpop.f32.mrb[0].mxu0
        %v1460 = vadd.f32 %v1347, %v1459
        %v1461 = vpop.f32.mrb[0].mxu0
        %v1462 = vadd.f32 %v1349, %v1461
        %v1463 = vpop.f32.mrb[0].mxu0
        %v1464 = vadd.f32 %v1351, %v1463
        %v1465 = vpop.f32.mrb[0].mxu0
        %v1466 = vadd.f32 %v1353, %v1465
        %1467 = vmatprep.mubr.bf16.mxu0 %v971
        %1468 = vmatmul.mubr.bf16.gmra.mrb[0].mxu0 %v970
        %v1469 = vpop.f32.mrb[0].mxu0
        %v1470 = vadd.f32 %v1357, %v1469
        %v1471 = vpop.f32.mrb[0].mxu0
        %v1472 = vadd.f32 %v1359, %v1471
        %v1473 = vpop.f32.mrb[0].mxu0
        %v1474 = vadd.f32 %v1361, %v1473
        %v1475 = vpop.f32.mrb[0].mxu0
        %v1476 = vadd.f32 %v1363, %v1475
        %1477 = vmatprep.mubr.bf16.mxu0 %v979
        %1478 = vmatmul.mubr.bf16.gmra.mrb[0].mxu0 %v978
        %v1479 = vpop.f32.mrb[0].mxu0
        %v1480 = vadd.f32 %v1367, %v1479
        %v1481 = vpop.f32.mrb[0].mxu0
        %v1482 = vadd.f32 %v1369, %v1481
        %v1483 = vpop.f32.mrb[0].mxu0
        %v1484 = vadd.f32 %v1371, %v1483
        %v1485 = vpop.f32.mrb[0].mxu0
        %v1486 = vadd.f32 %v1373, %v1485
        %1487 = vmatprep.mubr.bf16.mxu0 %v987
        %1488 = vmatmul.mubr.bf16.gmra.mrb[0].mxu0 %v986
        %v1489 = vpop.f32.mrb[0].mxu0
        %v1490 = vadd.f32 %v1377, %v1489
        %v1491 = vpop.f32.mrb[0].mxu0
        %v1492 = vadd.f32 %v1379, %v1491
        %v1493 = vpop.f32.mrb[0].mxu0
        %v1494 = vadd.f32 %v1381, %v1493
        %v1495 = vpop.f32.mrb[0].mxu0
        %v1496 = vadd.f32 %v1383, %v1495
        %1497 = vmatprep.mubr.bf16.mxu0 %v995
        %1498 = vmatmul.mubr.bf16.gmra.mrb[0].mxu0 %v994
        %v1499 = vpop.f32.mrb[0].mxu0
        %v1500 = vadd.f32 %v1387, %v1499
        %v1501 = vpop.f32.mrb[0].mxu0
        %v1502 = vadd.f32 %v1389, %v1501
        %v1503 = vpop.f32.mrb[0].mxu0
        %v1504 = vadd.f32 %v1391, %v1503
        %v1505 = vpop.f32.mrb[0].mxu0
        %v1506 = vadd.f32 %v1393, %v1505
        %1507 = vmatprep.mubr.bf16.mxu0 %v1003
        %1508 = vmatmul.mubr.bf16.gmra.mrb[0].mxu0 %v1002
        %v1509 = vpop.f32.mrb[0].mxu0
        %v1510 = vadd.f32 %v1397, %v1509
        %v1511 = vpop.f32.mrb[0].mxu0
        %v1512 = vadd.f32 %v1399, %v1511
        %v1513 = vpop.f32.mrb[0].mxu0
        %v1514 = vadd.f32 %v1401, %v1513
        %v1515 = vpop.f32.mrb[0].mxu0
        %v1516 = vadd.f32 %v1403, %v1515
        %1517 = vmatprep.mubr.bf16.mxu0 %v1011
        %1518 = vmatmul.mubr.bf16.gmra.mrb[0].mxu0 %v1010
        %v1519 = vpop.f32.mrb[0].mxu0
        %v1520 = vadd.f32 %v1407, %v1519
        %v1521 = vpop.f32.mrb[0].mxu0
        %v1522 = vadd.f32 %v1409, %v1521
        %v1523 = vpop.f32.mrb[0].mxu0
        %v1524 = vadd.f32 %v1411, %v1523
        %v1525 = vpop.f32.mrb[0].mxu0
        %v1526 = vadd.f32 %v1413, %v1525
        %1527 = vdwg.mxu0
        %v1528 = vmul.f32 %v1450, %v1450
        %v1529 = vmul.f32 %v1452, %v1452
        %v1530 = vmul.f32 %v1454, %v1454
        %v1531 = vmul.f32 %v1456, %v1456
        %v1532 = vmul.f32 %v1460, %v1460
        %v1533 = vmul.f32 %v1462, %v1462
        %v1534 = vmul.f32 %v1464, %v1464
        %v1535 = vmul.f32 %v1466, %v1466
        %v1536 = vmul.f32 %v1470, %v1470
        %v1537 = vmul.f32 %v1472, %v1472
        %v1538 = vmul.f32 %v1474, %v1474
        %v1539 = vmul.f32 %v1476, %v1476
        %v1540 = vmul.f32 %v1480, %v1480
        %v1541 = vmul.f32 %v1482, %v1482
        %v1542 = vmul.f32 %v1484, %v1484
        %v1543 = vmul.f32 %v1486, %v1486
        %v1544 = vmul.f32 %v1490, %v1490
        %v1545 = vmul.f32 %v1492, %v1492
        %v1546 = vmul.f32 %v1494, %v1494
        %v1547 = vmul.f32 %v1496, %v1496
        %v1548 = vmul.f32 %v1500, %v1500
        %v1549 = vmul.f32 %v1502, %v1502
        %v1550 = vmul.f32 %v1504, %v1504
        %v1551 = vmul.f32 %v1506, %v1506
        %v1552 = vmul.f32 %v1510, %v1510
        %v1553 = vmul.f32 %v1512, %v1512
        %v1554 = vmul.f32 %v1514, %v1514
        %v1555 = vmul.f32 %v1516, %v1516
        %v1556 = vmul.f32 %v1520, %v1520
        %v1557 = vmul.f32 %v1522, %v1522
        %v1558 = vmul.f32 %v1524, %v1524
        %v1559 = vmul.f32 %v1526, %v1526
        %v1560 = vadd.f32 %v1528, %v1530
        %v1561 = vadd.f32 %v1560, %v1532
        %v1562 = vadd.f32 %v1561, %v1534
        %v1563 = vadd.f32 %v1562, %v1536
        %v1564 = vadd.f32 %v1563, %v1538
        %v1565 = vadd.f32 %v1564, %v1540
        %v1566 = vadd.f32 %v1565, %v1542
        %v1567 = vadd.f32 %v1566, %v1544
        %v1568 = vadd.f32 %v1567, %v1546
        %v1569 = vadd.f32 %v1568, %v1548
        %v1570 = vadd.f32 %v1569, %v1550
        %v1571 = vadd.f32 %v1570, %v1552
        %v1572 = vadd.f32 %v1571, %v1554
        %v1573 = vadd.f32 %v1572, %v1556
        %v1574 = vadd.f32 %v1573, %v1558
        %v1575 = vrot.slane %v1574, 4
        %v1576 = vadd.f32 %v1574, %v1575
        %v1577 = vrot.slane %v1576, 2
        %v1578 = vadd.f32 %v1576, %v1577
        %v1579 = vrot.slane %v1578, 1
        %v1580 = vadd.f32 %v1578, %v1579
        %v1581 = vadd.f32 %v1529, %v1531
        %v1582 = vadd.f32 %v1581, %v1533
        %v1583 = vadd.f32 %v1582, %v1535
        %v1584 = vadd.f32 %v1583, %v1537
        %v1585 = vadd.f32 %v1584, %v1539
        %v1586 = vadd.f32 %v1585, %v1541
        %v1587 = vadd.f32 %v1586, %v1543
        %v1588 = vadd.f32 %v1587, %v1545
        %v1589 = vadd.f32 %v1588, %v1547
        %v1590 = vadd.f32 %v1589, %v1549
        %v1591 = vadd.f32 %v1590, %v1551
        %v1592 = vadd.f32 %v1591, %v1553
        %v1593 = vadd.f32 %v1592, %v1555
        %v1594 = vadd.f32 %v1593, %v1557
        %v1595 = vadd.f32 %v1594, %v1559
        %v1596 = vrot.slane %v1595, 4
        %v1597 = vadd.f32 %v1595, %v1596
        %v1598 = vrot.slane %v1597, 2
        %v1599 = vadd.f32 %v1597, %v1598
        %v1600 = vrot.slane %v1599, 1
        %v1601 = vadd.f32 %v1599, %v1600
        %v1602 = vmax.f32 %v1580, 1e-24
        %v1603 = vmax.f32 %v1601, 1e-24
        %v1604 = vrsqrt.pop %v1602
        %v1605 = vrsqrt.pop %v1603
        %v1606 = vmul.f32 %v1450, %v1604
        %v1607 = vmul.f32 %v1452, %v1605
        %v1608 = vmul.f32 %v1454, %v1604
        %v1609 = vmul.f32 %v1456, %v1605
        %v1610 = vmul.f32 %v1460, %v1604
        %v1611 = vmul.f32 %v1462, %v1605
        %v1612 = vmul.f32 %v1464, %v1604
        %v1613 = vmul.f32 %v1466, %v1605
        %v1614 = vmul.f32 %v1470, %v1604
        %v1615 = vmul.f32 %v1472, %v1605
        %v1616 = vmul.f32 %v1474, %v1604
        %v1617 = vmul.f32 %v1476, %v1605
        %v1618 = vmul.f32 %v1480, %v1604
        %v1619 = vmul.f32 %v1482, %v1605
        %v1620 = vmul.f32 %v1484, %v1604
        %v1621 = vmul.f32 %v1486, %v1605
        %v1622 = vmul.f32 %v1490, %v1604
        %v1623 = vmul.f32 %v1492, %v1605
        %v1624 = vmul.f32 %v1494, %v1604
        %v1625 = vmul.f32 %v1496, %v1605
        %v1626 = vmul.f32 %v1500, %v1604
        %v1627 = vmul.f32 %v1502, %v1605
        %v1628 = vmul.f32 %v1504, %v1604
        %v1629 = vmul.f32 %v1506, %v1605
        %v1630 = vmul.f32 %v1510, %v1604
        %v1631 = vmul.f32 %v1512, %v1605
        %v1632 = vmul.f32 %v1514, %v1604
        %v1633 = vmul.f32 %v1516, %v1605
        %v1634 = vmul.f32 %v1520, %v1604
        %v1635 = vmul.f32 %v1522, %v1605
        %v1636 = vmul.f32 %v1524, %v1604
        %v1637 = vmul.f32 %v1526, %v1605
        %v1638 = vpack.c.bf16 %v1608, %v1606
        %v1639 = vpack.c.bf16 %v1609, %v1607
        %v1640 = vpack.c.bf16 %v1612, %v1610
        %v1641 = vpack.c.bf16 %v1613, %v1611
        %v1642 = vpack.c.bf16 %v1616, %v1614
        %v1643 = vpack.c.bf16 %v1617, %v1615
        %v1644 = vpack.c.bf16 %v1620, %v1618
        %v1645 = vpack.c.bf16 %v1621, %v1619
        %v1646 = vpack.c.bf16 %v1624, %v1622
        %v1647 = vpack.c.bf16 %v1625, %v1623
        %v1648 = vpack.c.bf16 %v1628, %v1626
        %v1649 = vpack.c.bf16 %v1629, %v1627
        %v1650 = vpack.c.bf16 %v1632, %v1630
        %v1651 = vpack.c.bf16 %v1633, %v1631
        %v1652 = vpack.c.bf16 %v1636, %v1634
        %v1653 = vpack.c.bf16 %v1637, %v1635
        %v1654 = vld [vmem:[#allocation9] sm:$0xf]
        %v1655 = vld [vmem:[#allocation9 + $0x4] sm:$0xf]
        %v1656 = vld [vmem:[#allocation9 + $0x8] sm:$0xf]
        %v1657 = vld [vmem:[#allocation9 + $0xc] sm:$0xf]
        %v1658 = vld [vmem:[#allocation9 + $0x10] sm:$0xf]
        %v1659 = vld [vmem:[#allocation9 + $0x14] sm:$0xf]
        %v1660 = vld [vmem:[#allocation9 + $0x18] sm:$0xf]
        %v1661 = vld [vmem:[#allocation9 + $0x1c] sm:$0xf]
        %v1670 = vunpack.c.l.b16 %v1654
        %v1671 = vunpack.c.l.b16 %v1655
        %v1672 = vunpack.c.l.b16 %v1656
        %v1673 = vunpack.c.l.b16 %v1657
        %v1674 = vunpack.c.l.b16 %v1658
        %v1675 = vunpack.c.l.b16 %v1659
        %v1676 = vunpack.c.l.b16 %v1660
        %v1677 = vunpack.c.l.b16 %v1661
        %v1678 = vpack.c.b16 %v1671, %v1670
        %v1679 = vpack.c.b16 %v1673, %v1672
        %v1680 = vpack.c.b16 %v1675, %v1674
        %v1681 = vpack.c.b16 %v1677, %v1676
        %1686 = vmatprep.subr.bf16.mxu0 %v1639
        %1687 = vmatpush1.bf16.msra.mxu0 %v1638
        %1688 = vmatprep.subr.bf16.mxu0 %v1641
        %1689 = vmatpush1.bf16.msra.mxu0 %v1640
        %1690 = vmatprep.subr.bf16.mxu0 %v1643
        %1691 = vmatpush1.bf16.msra.mxu0 %v1642
        %1692 = vmatprep.subr.bf16.mxu0 %v1645
        %1693 = vmatpush1.bf16.msra.mxu0 %v1644
        %1694 = vmatprep.subr.bf16.mxu0 %v1647
        %1695 = vmatpush1.bf16.msra.mxu0 %v1646
        %1696 = vmatprep.subr.bf16.mxu0 %v1649
        %1697 = vmatpush1.bf16.msra.mxu0 %v1648
        %1698 = vmatprep.subr.bf16.mxu0 %v1651
        %1699 = vmatpush1.bf16.msra.mxu0 %v1650
        %1700 = vmatprep.subr.bf16.mxu0 %v1653
        %1701 = vmatpush1.bf16.msra.mxu0 %v1652
        %1702 = vmatprep.subr.bf16.mxu0 0
        %1703 = vmatpush1.bf16.msra.mxu0 0
        %1704 = vmatprep.subr.bf16.mxu0 0
        %1705 = vmatpush1.bf16.msra.mxu0 0
        %1706 = vmatprep.subr.bf16.mxu0 0
        %1707 = vmatpush1.bf16.msra.mxu0 0
        %1708 = vmatprep.subr.bf16.mxu0 0
        %1709 = vmatpush1.bf16.msra.mxu0 0
        %1710 = vmatprep.subr.bf16.mxu0 0
        %1711 = vmatpush1.bf16.msra.mxu0 0
        %1712 = vmatprep.subr.bf16.mxu0 0
        %1713 = vmatpush1.bf16.msra.mxu0 0
        %1714 = vmatprep.subr.bf16.mxu0 0
        %1715 = vmatpush1.bf16.msra.mxu0 0
        %1716 = vmatprep.subr.bf16.mxu0 0
        %1717 = vmatpush1.bf16.msra.mxu0 0
        %1718 = vmatprep.mubr.bf16.mxu0 0
        %1719 = vmatmul.mubr.bf16.gmra.mrb[0].mxu0 %v1678
        %v1720 = vpop.f32.mrb[0].mxu0
        %v1721 = vadd.f32 0.0, %v1720
        %v1722 = vpop.f32.mrb[0].mxu0
        %v1723 = vadd.f32 0.0, %v1722
        %v1724 = vpop.f32.mrb[0].mxu0
        %v1725 = vadd.f32 0.0, %v1724
        %v1726 = vpop.f32.mrb[0].mxu0
        %v1727 = vadd.f32 0.0, %v1726
        %1728 = vmatprep.mubr.bf16.mxu0 0
        %1729 = vmatmul.mubr.bf16.gmra.mrb[0].mxu0 %v1679
        %v1730 = vpop.f32.mrb[0].mxu0
        %v1731 = vadd.f32 0.0, %v1730
        %v1732 = vpop.f32.mrb[0].mxu0
        %v1733 = vadd.f32 0.0, %v1732
        %v1734 = vpop.f32.mrb[0].mxu0
        %v1735 = vadd.f32 0.0, %v1734
        %v1736 = vpop.f32.mrb[0].mxu0
        %v1737 = vadd.f32 0.0, %v1736
        %1738 = vmatprep.mubr.bf16.mxu0 0
        %1739 = vmatmul.mubr.bf16.gmra.mrb[0].mxu0 %v1680
        %v1740 = vpop.f32.mrb[0].mxu0
        %v1741 = vadd.f32 0.0, %v1740
        %v1742 = vpop.f32.mrb[0].mxu0
        %v1743 = vadd.f32 0.0, %v1742
        %v1744 = vpop.f32.mrb[0].mxu0
        %v1745 = vadd.f32 0.0, %v1744
        %v1746 = vpop.f32.mrb[0].mxu0
        %v1747 = vadd.f32 0.0, %v1746
        %1748 = vmatprep.mubr.bf16.mxu0 0
        %1749 = vmatmul.mubr.bf16.gmra.mrb[0].mxu0 %v1681
        %v1750 = vpop.f32.mrb[0].mxu0
        %v1751 = vadd.f32 0.0, %v1750
        %v1752 = vpop.f32.mrb[0].mxu0
        %v1753 = vadd.f32 0.0, %v1752
        %v1754 = vpop.f32.mrb[0].mxu0
        %v1755 = vadd.f32 0.0, %v1754
        %v1756 = vpop.f32.mrb[0].mxu0
        %v1757 = vadd.f32 0.0, %v1756
        %1758 = vdwg.mxu0
        %v1759 = vmax.f32 %v1721, %v1731
        %v1760 = vmax.f32 %v1725, %v1735
        %v1761 = vmax.f32 %v1759, %v1741
        %v1762 = vmax.f32 %v1760, %v1745
        %v1763 = vmax.f32 %v1761, %v1751
        %v1764 = vmax.f32 %v1762, %v1755
        %v1765 = vmax.f32 %v1763, %v1764
        %v1766 = vrot.slane %v1765, 4
        %v1767 = vmax.f32 %v1765, %v1766
        %v1768 = vrot.slane %v1767, 2
        %v1769 = vmax.f32 %v1767, %v1768
        %v1770 = vrot.slane %v1769, 1
        %v1771 = vmax.f32 %v1769, %v1770
        %v1772 = vmax.f32 %v1723, %v1733
        %v1773 = vmax.f32 %v1727, %v1737
        %v1774 = vmax.f32 %v1772, %v1743
        %v1775 = vmax.f32 %v1773, %v1747
        %v1776 = vmax.f32 %v1774, %v1753
        %v1777 = vmax.f32 %v1775, %v1757
        %v1778 = vmax.f32 %v1776, %v1777
        %v1779 = vrot.slane %v1778, 4
        %v1780 = vmax.f32 %v1778, %v1779
        %v1781 = vrot.slane %v1780, 2
        %v1782 = vmax.f32 %v1780, %v1781
        %v1783 = vrot.slane %v1782, 1
        %v1784 = vmax.f32 %v1782, %v1783
        %v1785 = vsub.f32 %v1721, %v1771
        %v1786 = vsub.f32 %v1723, %v1784
        %v1787 = vsub.f32 %v1725, %v1771
        %v1788 = vsub.f32 %v1727, %v1784
        %v1789 = vsub.f32 %v1731, %v1771
        %v1790 = vsub.f32 %v1733, %v1784
        %v1791 = vsub.f32 %v1735, %v1771
        %v1792 = vsub.f32 %v1737, %v1784
        %v1793 = vsub.f32 %v1741, %v1771
        %v1794 = vsub.f32 %v1743, %v1784
        %v1795 = vsub.f32 %v1745, %v1771
        %v1796 = vsub.f32 %v1747, %v1784
        %v1797 = vsub.f32 %v1751, %v1771
        %v1798 = vsub.f32 %v1753, %v1784
        %v1799 = vsub.f32 %v1755, %v1771
        %v1800 = vsub.f32 %v1757, %v1784
        %v1801 = vmul.f32 %v1785, 1.442695
        %v1802 = vpow.pop %v1801
        %v1803 = vmul.f32 %v1786, 1.442695
        %v1804 = vpow.pop %v1803
        %v1805 = vmul.f32 %v1787, 1.442695
        %v1806 = vpow.pop %v1805
        %v1807 = vmul.f32 %v1788, 1.442695
        %v1808 = vpow.pop %v1807
        %v1809 = vmul.f32 %v1789, 1.442695
        %v1810 = vpow.pop %v1809
        %v1811 = vmul.f32 %v1790, 1.442695
        %v1812 = vpow.pop %v1811
        %v1813 = vmul.f32 %v1791, 1.442695
        %v1814 = vpow.pop %v1813
        %v1815 = vmul.f32 %v1792, 1.442695
        %v1816 = vpow.pop %v1815
        %v1817 = vmul.f32 %v1793, 1.442695
        %v1818 = vpow.pop %v1817
        %v1819 = vmul.f32 %v1794, 1.442695
        %v1820 = vpow.pop %v1819
        %v1821 = vmul.f32 %v1795, 1.442695
        %v1822 = vpow.pop %v1821
        %v1823 = vmul.f32 %v1796, 1.442695
        %v1824 = vpow.pop %v1823
        %v1825 = vmul.f32 %v1797, 1.442695
        %v1826 = vpow.pop %v1825
        %v1827 = vmul.f32 %v1798, 1.442695
        %v1828 = vpow.pop %v1827
        %v1829 = vmul.f32 %v1799, 1.442695
        %v1830 = vpow.pop %v1829
        %v1831 = vmul.f32 %v1800, 1.442695
        %v1832 = vpow.pop %v1831
        %v1833 = vadd.f32 %v1802, %v1806
        %v1834 = vadd.f32 %v1833, %v1810
        %v1835 = vadd.f32 %v1834, %v1814
        %v1836 = vadd.f32 %v1835, %v1818
        %v1837 = vadd.f32 %v1836, %v1822
        %v1838 = vadd.f32 %v1837, %v1826
        %v1839 = vadd.f32 %v1838, %v1830
        %v1840 = vrot.slane %v1839, 4
        %v1841 = vadd.f32 %v1839, %v1840
        %v1842 = vrot.slane %v1841, 2
        %v1843 = vadd.f32 %v1841, %v1842
        %v1844 = vrot.slane %v1843, 1
        %v1845 = vadd.f32 %v1843, %v1844
        %v1846 = vadd.f32 %v1804, %v1808
        %v1847 = vadd.f32 %v1846, %v1812
        %v1848 = vadd.f32 %v1847, %v1816
        %v1849 = vadd.f32 %v1848, %v1820
        %v1850 = vadd.f32 %v1849, %v1824
        %v1851 = vadd.f32 %v1850, %v1828
        %v1852 = vadd.f32 %v1851, %v1832
        %v1853 = vrot.slane %v1852, 4
        %v1854 = vadd.f32 %v1852, %v1853
        %v1855 = vrot.slane %v1854, 2
        %v1856 = vadd.f32 %v1854, %v1855
        %v1857 = vrot.slane %v1856, 1
        %v1858 = vadd.f32 %v1856, %v1857
        %v1859 = vrcp.pop %v1845
        %v1860 = vrcp.pop %v1858
        %v1861 = vmul.f32 %v1802, %v1859
        %v1862 = vmul.f32 %v1804, %v1860
        %v1863 = vmul.f32 %v1806, %v1859
        %v1864 = vmul.f32 %v1808, %v1860
        %v1865 = vmul.f32 %v1810, %v1859
        %v1866 = vmul.f32 %v1812, %v1860
        %v1867 = vmul.f32 %v1814, %v1859
        %v1868 = vmul.f32 %v1816, %v1860
        %v1869 = vmul.f32 %v1818, %v1859
        %v1870 = vmul.f32 %v1820, %v1860
        %v1871 = vmul.f32 %v1822, %v1859
        %v1872 = vmul.f32 %v1824, %v1860
        %v1873 = vmul.f32 %v1826, %v1859
        %v1874 = vmul.f32 %v1828, %v1860
        %v1875 = vmul.f32 %v1830, %v1859
        %v1876 = vmul.f32 %v1832, %v1860
        %v1877 = vld [vmem:[#allocation2] sm:$0xff]
        %v1878 = vld [vmem:[#allocation2 + $0x8] sm:$0xff]
        %v1879 = vld [vmem:[#allocation2 + $0x10] sm:$0xff]
        %v1880 = vld [vmem:[#allocation2 + $0x18] sm:$0xff]
        %v1881 = vld [vmem:[#allocation2 + $0x20] sm:$0xff]
        %v1882 = vld [vmem:[#allocation2 + $0x28] sm:$0xff]
        %v1883 = vld [vmem:[#allocation2 + $0x30] sm:$0xff]
        %v1884 = vld [vmem:[#allocation2 + $0x38] sm:$0xff]
        %v1885 = vld [vmem:[#allocation2 + $0x40] sm:$0xff]
        %v1886 = vld [vmem:[#allocation2 + $0x48] sm:$0xff]
        %v1887 = vld [vmem:[#allocation2 + $0x50] sm:$0xff]
        %v1888 = vld [vmem:[#allocation2 + $0x58] sm:$0xff]
        %v1889 = vld [vmem:[#allocation2 + $0x60] sm:$0xff]
        %v1890 = vld [vmem:[#allocation2 + $0x68] sm:$0xff]
        %v1891 = vld [vmem:[#allocation2 + $0x70] sm:$0xff]
        %v1892 = vld [vmem:[#allocation2 + $0x78] sm:$0xff]
        %v1893 = vpack.c.bf16 %v1863, %v1861
        %v1894 = vpack.c.bf16 %v1864, %v1862
        %v1895 = vpack.c.bf16 %v1867, %v1865
        %v1896 = vpack.c.bf16 %v1868, %v1866
        %v1897 = vpack.c.bf16 %v1871, %v1869
        %v1898 = vpack.c.bf16 %v1872, %v1870
        %v1899 = vpack.c.bf16 %v1875, %v1873
        %v1900 = vpack.c.bf16 %v1876, %v1874
        %1901 = vmatprep.subr.bf16.mxu0 %v1894
        %1902 = vmatpush1.bf16.xpose.msra.mxu0 %v1893
        %1903 = vmatprep.subr.bf16.mxu0 %v1896
        %1904 = vmatpush1.bf16.xpose.msra.mxu0 %v1895
        %1905 = vmatprep.subr.bf16.mxu0 %v1898
        %1906 = vmatpush1.bf16.xpose.msra.mxu0 %v1897
        %1907 = vmatprep.subr.bf16.mxu0 %v1900
        %1908 = vmatpush1.bf16.xpose.msra.mxu0 %v1899
        %1909 = vmatprep.subr.bf16.mxu0 0
        %1910 = vmatpush1.bf16.xpose.msra.mxu0 0
        %1911 = vmatprep.subr.bf16.mxu0 0
        %1912 = vmatpush1.bf16.xpose.msra.mxu0 0
        %1913 = vmatprep.subr.bf16.mxu0 0
        %1914 = vmatpush1.bf16.xpose.msra.mxu0 0
        %1915 = vmatprep.subr.bf16.mxu0 0
        %1916 = vmatpush1.bf16.xpose.msra.mxu0 0
        %1917 = vmatprep.subr.bf16.mxu0 0
        %1918 = vmatpush1.bf16.xpose.msra.mxu0 0
        %1919 = vmatprep.subr.bf16.mxu0 0
        %1920 = vmatpush1.bf16.xpose.msra.mxu0 0
        %1921 = vmatprep.subr.bf16.mxu0 0
        %1922 = vmatpush1.bf16.xpose.msra.mxu0 0
        %1923 = vmatprep.subr.bf16.mxu0 0
        %1924 = vmatpush1.bf16.xpose.msra.mxu0 0
        %1925 = vmatprep.subr.bf16.mxu0 0
        %1926 = vmatpush1.bf16.xpose.msra.mxu0 0
        %1927 = vmatprep.subr.bf16.mxu0 0
        %1928 = vmatpush1.bf16.xpose.msra.mxu0 0
        %1929 = vmatprep.subr.bf16.mxu0 0
        %1930 = vmatpush1.bf16.xpose.msra.mxu0 0
        %1931 = vmatprep.subr.bf16.mxu0 0
        %1932 = vmatpush1.bf16.xpose.msra.mxu0 0
        %1933 = vmatprep.mubr.bf16.mxu0 %v1639
        %1934 = vmatmul.mubr.bf16.gmra.mrb[0].mxu0 %v1638
        %v1935 = vpop.f32.mrb[0].mxu0
        %v1936 = vadd.f32 0.0, %v1935
        %v1937 = vpop.f32.mrb[0].mxu0
        %v1938 = vpop.f32.mrb[0].mxu0
        %v1939 = vadd.f32 0.0, %v1938
        %v1940 = vpop.f32.mrb[0].mxu0
        %1941 = vmatprep.mubr.bf16.mxu0 %v1641
        %1942 = vmatmul.mubr.bf16.gmra.mrb[0].mxu0 %v1640
        %v1943 = vpop.f32.mrb[0].mxu0
        %v1944 = vadd.f32 0.0, %v1943
        %v1945 = vpop.f32.mrb[0].mxu0
        %v1946 = vpop.f32.mrb[0].mxu0
        %v1947 = vadd.f32 0.0, %v1946
        %v1948 = vpop.f32.mrb[0].mxu0
        %1949 = vmatprep.mubr.bf16.mxu0 %v1643
        %1950 = vmatmul.mubr.bf16.gmra.mrb[0].mxu0 %v1642
        %v1951 = vpop.f32.mrb[0].mxu0
        %v1952 = vadd.f32 0.0, %v1951
        %v1953 = vpop.f32.mrb[0].mxu0
        %v1954 = vpop.f32.mrb[0].mxu0
        %v1955 = vadd.f32 0.0, %v1954
        %v1956 = vpop.f32.mrb[0].mxu0
        %1957 = vmatprep.mubr.bf16.mxu0 %v1645
        %1958 = vmatmul.mubr.bf16.gmra.mrb[0].mxu0 %v1644
        %v1959 = vpop.f32.mrb[0].mxu0
        %v1960 = vadd.f32 0.0, %v1959
        %v1961 = vpop.f32.mrb[0].mxu0
        %v1962 = vpop.f32.mrb[0].mxu0
        %v1963 = vadd.f32 0.0, %v1962
        %v1964 = vpop.f32.mrb[0].mxu0
        %1965 = vmatprep.mubr.bf16.mxu0 %v1647
        %1966 = vmatmul.mubr.bf16.gmra.mrb[0].mxu0 %v1646
        %v1967 = vpop.f32.mrb[0].mxu0
        %v1968 = vadd.f32 0.0, %v1967
        %v1969 = vpop.f32.mrb[0].mxu0
        %v1970 = vpop.f32.mrb[0].mxu0
        %v1971 = vadd.f32 0.0, %v1970
        %v1972 = vpop.f32.mrb[0].mxu0
        %1973 = vmatprep.mubr.bf16.mxu0 %v1649
        %1974 = vmatmul.mubr.bf16.gmra.mrb[0].mxu0 %v1648
        %v1975 = vpop.f32.mrb[0].mxu0
        %v1976 = vadd.f32 0.0, %v1975
        %v1977 = vpop.f32.mrb[0].mxu0
        %v1978 = vpop.f32.mrb[0].mxu0
        %v1979 = vadd.f32 0.0, %v1978
        %v1980 = vpop.f32.mrb[0].mxu0
        %1981 = vmatprep.mubr.bf16.mxu0 %v1651
        %1982 = vmatmul.mubr.bf16.gmra.mrb[0].mxu0 %v1650
        %v1983 = vpop.f32.mrb[0].mxu0
        %v1984 = vadd.f32 0.0, %v1983
        %v1985 = vpop.f32.mrb[0].mxu0
        %v1986 = vpop.f32.mrb[0].mxu0
        %v1987 = vadd.f32 0.0, %v1986
        %v1988 = vpop.f32.mrb[0].mxu0
        %1989 = vmatprep.mubr.bf16.mxu0 %v1653
        %1990 = vmatmul.mubr.bf16.gmra.mrb[0].mxu0 %v1652
        %v1991 = vpop.f32.mrb[0].mxu0
        %v1992 = vadd.f32 0.0, %v1991
        %v1993 = vpop.f32.mrb[0].mxu0
        %v1994 = vpop.f32.mrb[0].mxu0
        %v1995 = vadd.f32 0.0, %v1994
        %v1996 = vpop.f32.mrb[0].mxu0
        %1997 = vdwg.mxu0
        %v1998 = vadd.f32 %v1877, %v1936
        %v1999 = vadd.f32 %v1878, %v1939
        %v2000 = vadd.f32 %v1879, %v1944
        %v2001 = vadd.f32 %v1880, %v1947
        %v2002 = vadd.f32 %v1881, %v1952
        %v2003 = vadd.f32 %v1882, %v1955
        %v2004 = vadd.f32 %v1883, %v1960
        %v2005 = vadd.f32 %v1884, %v1963
        %v2006 = vadd.f32 %v1885, %v1968
        %v2007 = vadd.f32 %v1886, %v1971
        %v2008 = vadd.f32 %v1887, %v1976
        %v2009 = vadd.f32 %v1888, %v1979
        %v2010 = vadd.f32 %v1889, %v1984
        %v2011 = vadd.f32 %v1890, %v1987
        %v2012 = vadd.f32 %v1891, %v1992
        %v2013 = vadd.f32 %v1892, %v1995
        %vm2014 = vcmask 523264
        %2015 = vst.msk [vmem:[#allocation2] sm:$0xff] %vm2014, %v1998
        %2016 = vst.msk [vmem:[#allocation2 + $0x8] sm:$0xff] %vm2014, %v1999
        %2017 = vst.msk [vmem:[#allocation2 + $0x10] sm:$0xff] %vm2014, %v2000
        %2018 = vst.msk [vmem:[#allocation2 + $0x18] sm:$0xff] %vm2014, %v2001
        %2019 = vst.msk [vmem:[#allocation2 + $0x20] sm:$0xff] %vm2014, %v2002
        %2020 = vst.msk [vmem:[#allocation2 + $0x28] sm:$0xff] %vm2014, %v2003
        %2021 = vst.msk [vmem:[#allocation2 + $0x30] sm:$0xff] %vm2014, %v2004
        %2022 = vst.msk [vmem:[#allocation2 + $0x38] sm:$0xff] %vm2014, %v2005
        %2023 = vst.msk [vmem:[#allocation2 + $0x40] sm:$0xff] %vm2014, %v2006
        %2024 = vst.msk [vmem:[#allocation2 + $0x48] sm:$0xff] %vm2014, %v2007
        %2025 = vst.msk [vmem:[#allocation2 + $0x50] sm:$0xff] %vm2014, %v2008
        %2026 = vst.msk [vmem:[#allocation2 + $0x58] sm:$0xff] %vm2014, %v2009
        %2027 = vst.msk [vmem:[#allocation2 + $0x60] sm:$0xff] %vm2014, %v2010
        %2028 = vst.msk [vmem:[#allocation2 + $0x68] sm:$0xff] %vm2014, %v2011
        %2029 = vst.msk [vmem:[#allocation2 + $0x70] sm:$0xff] %vm2014, %v2012
        %2030 = vst.msk [vmem:[#allocation2 + $0x78] sm:$0xff] %vm2014, %v2013
        %v2031 = vld [vmem:[#allocation3] sm:$0xff]
        %v2032 = vld [vmem:[#allocation3 + $0x8] sm:$0xff]
        %v2033 = vld [vmem:[#allocation3 + $0x10] sm:$0xff]
        %v2034 = vld [vmem:[#allocation3 + $0x18] sm:$0xff]
        %v2035 = vld [vmem:[#allocation3 + $0x20] sm:$0xff]
        %v2036 = vld [vmem:[#allocation3 + $0x28] sm:$0xff]
        %v2037 = vld [vmem:[#allocation3 + $0x30] sm:$0xff]
        %v2038 = vld [vmem:[#allocation3 + $0x38] sm:$0xff]
        %v2039 = vadd.f32 %v1861, %v1862
        %2040 = vadd.xlane.f32.xlu0 %v2039
        %v2041 = vpop.xlane.xlu0 %2040
        %v2042 = vadd.f32 %v1863, %v1864
        %2043 = vadd.xlane.f32.xlu0 %v2042
        %v2044 = vpop.xlane.xlu0 %2043
        %v2045 = vadd.f32 %v1865, %v1866
        %2046 = vadd.xlane.f32.xlu0 %v2045
        %v2047 = vpop.xlane.xlu0 %2046
        %v2048 = vadd.f32 %v1867, %v1868
        %2049 = vadd.xlane.f32.xlu0 %v2048
        %v2050 = vpop.xlane.xlu0 %2049
        %v2051 = vadd.f32 %v1869, %v1870
        %2052 = vadd.xlane.f32.xlu0 %v2051
        %v2053 = vpop.xlane.xlu0 %2052
        %v2054 = vadd.f32 %v1871, %v1872
        %2055 = vadd.xlane.f32.xlu0 %v2054
        %v2056 = vpop.xlane.xlu0 %2055
        %v2057 = vadd.f32 %v1873, %v1874
        %2058 = vadd.xlane.f32.xlu0 %v2057
        %v2059 = vpop.xlane.xlu0 %2058
        %v2060 = vadd.f32 %v1875, %v1876
        %2061 = vadd.xlane.f32.xlu0 %v2060
        %v2062 = vpop.xlane.xlu0 %2061
        %v2063 = vadd.f32 %v2031, %v2041
        %v2064 = vadd.f32 %v2032, %v2044
        %v2065 = vadd.f32 %v2033, %v2047
        %v2066 = vadd.f32 %v2034, %v2050
        %v2067 = vadd.f32 %v2035, %v2053
        %v2068 = vadd.f32 %v2036, %v2056
        %v2069 = vadd.f32 %v2037, %v2059
        %v2070 = vadd.f32 %v2038, %v2062
        %vm2071 = vcmask 7168
        %2072 = vst.msk [vmem:[#allocation3] sm:$0xff] %vm2071, %v2063
        %2073 = vst.msk [vmem:[#allocation3 + $0x8] sm:$0xff] %vm2071, %v2064
        %2074 = vst.msk [vmem:[#allocation3 + $0x10] sm:$0xff] %vm2071, %v2065
        %2075 = vst.msk [vmem:[#allocation3 + $0x18] sm:$0xff] %vm2071, %v2066
        %2076 = vst.msk [vmem:[#allocation3 + $0x20] sm:$0xff] %vm2071, %v2067
        %2077 = vst.msk [vmem:[#allocation3 + $0x28] sm:$0xff] %vm2071, %v2068
        %2078 = vst.msk [vmem:[#allocation3 + $0x30] sm:$0xff] %vm2071, %v2069
        %2079 = vst.msk [vmem:[#allocation3 + $0x38] sm:$0xff] %vm2071, %v2070
        // Predicated region
        $region57: #{tpu_custom_call.1} parent=35 // pred_check
          %p2080 = pneg %p278
        $region58: #{tpu_custom_call.1} parent=35 // pred_check_branch
          %2082 = sbr.rel (%p2080) target = $region60
        $region59: #{tpu_custom_call.1} parent=35 // pred_region
          %v2083 = vld [vmem:[#allocation2] sm:$0xff]
          %v2084 = vld [vmem:[#allocation2 + $0x8] sm:$0xff]
          %v2085 = vld [vmem:[#allocation2 + $0x10] sm:$0xff]
          %v2086 = vld [vmem:[#allocation2 + $0x18] sm:$0xff]
          %v2087 = vld [vmem:[#allocation2 + $0x20] sm:$0xff]
          %v2088 = vld [vmem:[#allocation2 + $0x28] sm:$0xff]
          %v2089 = vld [vmem:[#allocation2 + $0x30] sm:$0xff]
          %v2090 = vld [vmem:[#allocation2 + $0x38] sm:$0xff]
          %v2091 = vld [vmem:[#allocation2 + $0x40] sm:$0xff]
          %v2092 = vld [vmem:[#allocation2 + $0x48] sm:$0xff]
          %v2093 = vld [vmem:[#allocation2 + $0x50] sm:$0xff]
          %v2094 = vld [vmem:[#allocation2 + $0x58] sm:$0xff]
          %v2095 = vld [vmem:[#allocation2 + $0x60] sm:$0xff]
          %v2096 = vld [vmem:[#allocation2 + $0x68] sm:$0xff]
          %v2097 = vld [vmem:[#allocation2 + $0x70] sm:$0xff]
          %v2098 = vld [vmem:[#allocation2 + $0x78] sm:$0xff]
          %2099 = vxpose.xlu0.b32.start [1/16] %v2083, 128
          %2100 = vxpose.xlu0.b32.cont [2/16] %v2084, 128
          %2101 = vxpose.xlu0.b32.cont [3/16] %v2085, 128
          %2102 = vxpose.xlu0.b32.cont [4/16] %v2086, 128
          %2103 = vxpose.xlu0.b32.cont [5/16] %v2087, 128
          %2104 = vxpose.xlu0.b32.cont [6/16] %v2088, 128
          %2105 = vxpose.xlu0.b32.cont [7/16] %v2089, 128
          %2106 = vxpose.xlu0.b32.cont [8/16] %v2090, 128
          %2107 = vxpose.xlu0.b32.cont [9/16] %v2091, 128
          %2108 = vxpose.xlu0.b32.cont [10/16] %v2092, 128
          %2109 = vxpose.xlu0.b32.cont [11/16] %v2093, 128
          %2110 = vxpose.xlu0.b32.cont [12/16] %v2094, 128
          %2111 = vxpose.xlu0.b32.cont [13/16] %v2095, 128
          %2112 = vxpose.xlu0.b32.cont [14/16] %v2096, 128
          %2113 = vxpose.xlu0.b32.cont [15/16] %v2097, 128
          %2114 = vxpose.xlu0.b32.end [16/16] %v2098, 128
          %v2115 = vpop.trf.xlu0
          %v2116 = vpop.trf.xlu0
          %v2117 = vpop.trf.xlu0
          %v2118 = vpop.trf.xlu0
          %v2119 = vpop.trf.xlu0
          %v2120 = vpop.trf.xlu0
          %v2121 = vpop.trf.xlu0
          %v2122 = vpop.trf.xlu0
          %v2123 = vpop.trf.xlu0
          %v2124 = vpop.trf.xlu0
          %v2125 = vpop.trf.xlu0
          %v2126 = vpop.trf.xlu0
          %v2127 = vpop.trf.xlu0
          %v2128 = vpop.trf.xlu0
          %v2129 = vpop.trf.xlu0
          %v2130 = vpop.trf.xlu0
          %v2131 = vld [vmem:[#allocation10] sm:$0xff]
          %v2132 = vld [vmem:[#allocation10 + $0x8] sm:$0xff]
          %v2133 = vld [vmem:[#allocation10 + $0x10] sm:$0xff]
          %v2134 = vld [vmem:[#allocation10 + $0x18] sm:$0xff]
          %v2135 = vld [vmem:[#allocation10 + $0x20] sm:$0xff]
          %v2136 = vld [vmem:[#allocation10 + $0x28] sm:$0xff]
          %v2137 = vld [vmem:[#allocation10 + $0x30] sm:$0xff]
          %v2138 = vld [vmem:[#allocation10 + $0x38] sm:$0xff]
          %v2139 = vld [vmem:[#allocation3] sm:$0xff]
          %v2140 = vld [vmem:[#allocation3 + $0x8] sm:$0xff]
          %v2141 = vld [vmem:[#allocation3 + $0x10] sm:$0xff]
          %v2142 = vld [vmem:[#allocation3 + $0x18] sm:$0xff]
          %v2143 = vld [vmem:[#allocation3 + $0x20] sm:$0xff]
          %v2144 = vld [vmem:[#allocation3 + $0x28] sm:$0xff]
          %v2145 = vld [vmem:[#allocation3 + $0x30] sm:$0xff]
          %v2146 = vld [vmem:[#allocation3 + $0x38] sm:$0xff]
          %2148 = vset.pattern.permute.xlu0 0
          %2149 = vperm.xlu0 %2148, %v2139
          %v2150 = vpop.permute.xlu0 %2149
          %2153 = vset.pattern.permute.xlu0 0
          %2154 = vperm.xlu0 %2153, %v2140
          %v2155 = vpop.permute.xlu0 %2154
          %2158 = vset.pattern.permute.xlu0 0
          %2159 = vperm.xlu0 %2158, %v2141
          %v2160 = vpop.permute.xlu0 %2159
          %2163 = vset.pattern.permute.xlu0 0
          %2164 = vperm.xlu0 %2163, %v2142
          %v2165 = vpop.permute.xlu0 %2164
          %2168 = vset.pattern.permute.xlu0 0
          %2169 = vperm.xlu0 %2168, %v2143
          %v2170 = vpop.permute.xlu0 %2169
          %2173 = vset.pattern.permute.xlu0 0
          %2174 = vperm.xlu0 %2173, %v2144
          %v2175 = vpop.permute.xlu0 %2174
          %2178 = vset.pattern.permute.xlu0 0
          %2179 = vperm.xlu0 %2178, %v2145
          %v2180 = vpop.permute.xlu0 %2179
          %2183 = vset.pattern.permute.xlu0 0
          %2184 = vperm.xlu0 %2183, %v2146
          %v2185 = vpop.permute.xlu0 %2184
          %v2187 = vmul.f32 %v2131, %v2150
          %v2188 = vmul.f32 %v2132, %v2155
          %v2189 = vmul.f32 %v2133, %v2160
          %v2190 = vmul.f32 %v2134, %v2165
          %v2191 = vmul.f32 %v2135, %v2170
          %v2192 = vmul.f32 %v2136, %v2175
          %v2193 = vmul.f32 %v2137, %v2180
          %v2194 = vmul.f32 %v2138, %v2185
          %v2195 = vsub.f32 %v2115, %v2187
          %v2196 = vsub.f32 %v2116, %v2188
          %v2197 = vsub.f32 %v2117, %v2189
          %v2198 = vsub.f32 %v2118, %v2190
          %v2199 = vsub.f32 %v2119, %v2191
          %v2200 = vsub.f32 %v2120, %v2192
          %v2201 = vsub.f32 %v2121, %v2193
          %v2202 = vsub.f32 %v2122, %v2194
          %v2203 = vmul.f32 %v2195, %v2195
          %v2204 = vmul.f32 %v2196, %v2196
          %v2205 = vmul.f32 %v2197, %v2197
          %v2206 = vmul.f32 %v2198, %v2198
          %v2207 = vmul.f32 %v2199, %v2199
          %v2208 = vmul.f32 %v2200, %v2200
          %v2209 = vmul.f32 %v2201, %v2201
          %v2210 = vmul.f32 %v2202, %v2202
          %2211 = vadd.xlane.f32.xlu0 %v2203
          %v2212 = vpop.xlane.xlu0 %2211
          %2213 = vadd.xlane.f32.xlu0 %v2204
          %v2214 = vpop.xlane.xlu0 %2213
          %2215 = vadd.xlane.f32.xlu0 %v2205
          %v2216 = vpop.xlane.xlu0 %2215
          %2217 = vadd.xlane.f32.xlu0 %v2206
          %v2218 = vpop.xlane.xlu0 %2217
          %2219 = vadd.xlane.f32.xlu0 %v2207
          %v2220 = vpop.xlane.xlu0 %2219
          %2221 = vadd.xlane.f32.xlu0 %v2208
          %v2222 = vpop.xlane.xlu0 %2221
          %2223 = vadd.xlane.f32.xlu0 %v2209
          %v2224 = vpop.xlane.xlu0 %2223
          %2225 = vadd.xlane.f32.xlu0 %v2210
          %v2226 = vpop.xlane.xlu0 %2225
          %v2227 = vmax.f32 %v2212, 1e-24
          %v2228 = vmax.f32 %v2214, 1e-24
          %v2229 = vmax.f32 %v2216, 1e-24
          %v2230 = vmax.f32 %v2218, 1e-24
          %v2231 = vmax.f32 %v2220, 1e-24
          %v2232 = vmax.f32 %v2222, 1e-24
          %v2233 = vmax.f32 %v2224, 1e-24
          %v2234 = vmax.f32 %v2226, 1e-24
          %v2235 = vrsqrt.pop %v2227
          %v2236 = vrsqrt.pop %v2228
          %v2237 = vrsqrt.pop %v2229
          %v2238 = vrsqrt.pop %v2230
          %v2239 = vrsqrt.pop %v2231
          %v2240 = vrsqrt.pop %v2232
          %v2241 = vrsqrt.pop %v2233
          %v2242 = vrsqrt.pop %v2234
          %v2243 = vmul.f32 %v2195, %v2235
          %v2244 = vmul.f32 %v2196, %v2236
          %v2245 = vmul.f32 %v2197, %v2237
          %v2246 = vmul.f32 %v2198, %v2238
          %v2247 = vmul.f32 %v2199, %v2239
          %v2248 = vmul.f32 %v2200, %v2240
          %v2249 = vmul.f32 %v2201, %v2241
          %v2250 = vmul.f32 %v2202, %v2242
          %v2251 = vmul.f32 %v2243, %v2243
          %v2252 = vmul.f32 %v2244, %v2244
          %v2253 = vmul.f32 %v2245, %v2245
          %v2254 = vmul.f32 %v2246, %v2246
          %v2255 = vmul.f32 %v2247, %v2247
          %v2256 = vmul.f32 %v2248, %v2248
          %v2257 = vmul.f32 %v2249, %v2249
          %v2258 = vmul.f32 %v2250, %v2250
          %v2259 = vadd.f32 %v2251, %v2252
          %v2260 = vadd.f32 %v2259, %v2253
          %v2261 = vadd.f32 %v2260, %v2254
          %v2262 = vadd.f32 %v2261, %v2255
          %v2263 = vadd.f32 %v2262, %v2256
          %v2264 = vadd.f32 %v2263, %v2257
          %v2265 = vadd.f32 %v2264, %v2258
          %2266 = vadd.xlane.f32.xlu0 %v2265
          %v2267 = vpop.xlane.xlu0 %2266
          %v2268 = vrot.slane %v2267, 4
          %v2269 = vadd.f32 %v2267, %v2268
          %v2270 = vrot.slane %v2269, 2
          %v2271 = vadd.f32 %v2269, %v2270
          %v2272 = vrot.slane %v2271, 1
          %v2273 = vadd.f32 %v2271, %v2272
          %s2274 = vtos %v2273
          %s2275 = smax.f32 %s2274, 1e-24
          %v2276 = vstv %s2275
          %v2277 = vrsqrt.pop %v2276
          %s2278 = vtos %v2277
          %v2279 = vstv %s2278
          %v2280 = vmul.f32 %v2243, %v2279
          %v2281 = vmul.f32 %v2244, %v2279
          %v2282 = vmul.f32 %v2245, %v2279
          %v2283 = vmul.f32 %v2246, %v2279
          %v2284 = vmul.f32 %v2247, %v2279
          %v2285 = vmul.f32 %v2248, %v2279
          %v2286 = vmul.f32 %v2249, %v2279
          %v2287 = vmul.f32 %v2250, %v2279
          %v2288 = vmul.f32 %v2280, %v2280
          %v2289 = vmul.f32 %v2281, %v2281
          %v2290 = vmul.f32 %v2282, %v2282
          %v2291 = vmul.f32 %v2283, %v2283
          %v2292 = vmul.f32 %v2284, %v2284
          %v2293 = vmul.f32 %v2285, %v2285
          %v2294 = vmul.f32 %v2286, %v2286
          %v2295 = vmul.f32 %v2287, %v2287
          %v2296 = vadd.f32 %v2288, %v2289
          %v2297 = vadd.f32 %v2296, %v2290
          %v2298 = vadd.f32 %v2297, %v2291
          %v2299 = vadd.f32 %v2298, %v2292
          %v2300 = vadd.f32 %v2299, %v2293
          %v2301 = vadd.f32 %v2300, %v2294
          %v2302 = vadd.f32 %v2301, %v2295
          %2303 = vadd.xlane.f32.xlu0 %v2302
          %v2304 = vpop.xlane.xlu0 %2303
          %v2305 = vrot.slane %v2304, 4
          %v2306 = vadd.f32 %v2304, %v2305
          %v2307 = vrot.slane %v2306, 2
          %v2308 = vadd.f32 %v2306, %v2307
          %v2309 = vrot.slane %v2308, 1
          %v2310 = vadd.f32 %v2308, %v2309
          %s2311 = vtos %v2310
          %s2312 = smax.f32 %s2311, 1e-24
          %v2313 = vstv %s2312
          %v2314 = vrsqrt.pop %v2313
          %s2315 = vtos %v2314
          %v2316 = vstv %s2315
          %v2317 = vmul.f32 %v2280, %v2316
          %v2318 = vmul.f32 %v2281, %v2316
          %v2319 = vmul.f32 %v2282, %v2316
          %v2320 = vmul.f32 %v2283, %v2316
          %v2321 = vmul.f32 %v2284, %v2316
          %v2322 = vmul.f32 %v2285, %v2316
          %v2323 = vmul.f32 %v2286, %v2316
          %v2324 = vmul.f32 %v2287, %v2316
          %2325 = vst [vmem:[%s275] sm:$0xff] %v2317
          %2326 = vst [vmem:[%s275 + $0x8] sm:$0xff] %v2318
          %2327 = vst [vmem:[%s275 + $0x10] sm:$0xff] %v2319
          %2328 = vst [vmem:[%s275 + $0x18] sm:$0xff] %v2320
          %2329 = vst [vmem:[%s275 + $0x20] sm:$0xff] %v2321
          %2330 = vst [vmem:[%s275 + $0x28] sm:$0xff] %v2322
          %2331 = vst [vmem:[%s275 + $0x30] sm:$0xff] %v2323
          %2332 = vst [vmem:[%s275 + $0x38] sm:$0xff] %v2324
        $region60: #{tpu_custom_call.1} parent=35 // pred_fallthru
          _
        %s2333 = sand.u32 %s134, 1
        %s2334 = scalar_lea.sflag [#allocation6], %s2333
        %s2335 = sand.u32 %s134, 1
        %s2336 = smul.addr %s2335, 64
        %s2337 = scalar_lea.vmem [#allocation12], %s2336
        // Predicated region
        $region61: #{tpu_custom_call.1} parent=35 // pred_check
          %p2338 = pneg %p144
        $region62: #{tpu_custom_call.1} parent=35 // pred_check_branch
          %2340 = sbr.rel (%p2338) target = $region64
        $region63: #{tpu_custom_call.1} parent=35 // pred_region
          %s2342 = ssub.s32 1024, 1024
          %2343 = vsyncadd %s2334, %s2342
          %s2344 = smul.addr %s27, 8
          %s2345 = smul.addr %s2344, 128
          %s2346 = scalar_lea.hbm %s4, %s2345
          %s2347 = sshll.u32 %s2337, 4
          %s2348 = int_to_ptr.vmem [resolvable:$true] %s2347
          %2353 = dma.vmem_to_hbm [thread:$0]  %s2348, 1024, %s2346, %s2334, 128, 128, 8
        $region64: #{tpu_custom_call.1} parent=35 // pred_fallthru
          _
      $region36: #{tpu_custom_call.1} parent=5 // pred_fallthru
        _
      %p2354 = scmp.le.s32.totalorder 2, %s18
      // Predicated region
      $region65: #{tpu_custom_call.1} parent=5 // pred_check
        %p2355 = pneg %p2354
      $region66: #{tpu_custom_call.1} parent=5 // pred_check_branch
        %2357 = sbr.rel (%p2355) target = $region68
      $region67: #{tpu_custom_call.1} parent=5 // pred_region
        %s2358 = ssub.s32 %s18, 2
        // Predicated region
        $region69: #{tpu_custom_call.1} parent=67 // pred_check
          %p2359 = pneg %p150
        $region70: #{tpu_custom_call.1} parent=67 // pred_check_branch
          %2361 = sbr.rel (%p2359) target = $region72
        $region71: #{tpu_custom_call.1} parent=67 // pred_region
          %s2362 = sand.u32 %s135, 1
          %s2363 = scalar_lea.sflag [#allocation6], %s2362
          %s2364 = sand.u32 %s135, 1
          %s2365 = smul.addr %s2364, 64
          %s2366 = scalar_lea.vmem [#allocation12], %s2365
          %2367 = dma.done %s2363, 1024
        $region72: #{tpu_custom_call.1} parent=67 // pred_fallthru
          _
      $region68: #{tpu_custom_call.1} parent=5 // pred_fallthru
        _
    $region6: #{tpu_custom_call.1} parent=1 // loop_footer
      %s22 = sadd.s32 1, %s18
    $region7: #{tpu_custom_call.1} parent=1 // loop_footer_branch
      %17 = sbr.rel target = $region3
    $region8: #{tpu_custom_call.1} parent=1 // loop_exit
      _
    %2368 = vsyncpa [#allocation5], 1
    %s2369 = scalar_lea.sflag [#allocation5], 1
    %2370 = vsyncpa %s2369, 1
    %2371 = vsyncpa [#allocation8], 1
    %2372 = vsyncpa [#allocation11], 1
    %2373 = vsyncpa [#allocation6], 1
    %s2374 = scalar_lea.sflag [#allocation6], 1
    %2375 = vsyncpa %s2374, 1

</llo_original>
